<compile_context>
chip_gen: v6e
topology: v6e:2x2x1
jax: 0.10.0
libtpu: 0.0.40
codegen_flags: <defaults>
</compile_context>

<pallas_src>
import jax
import jax.numpy as jnp
from jax.experimental import pallas as pl
from jax.experimental.pallas import tpu as pltpu


def _bert_embeddings_kernel(wid_ref, tid_ref, pid_ref,
                            feat_ref, loc_ref,
                            wtab_ref, ptab_ref, ttab_ref,
                            w_img_ref, w_loc_ref, bias_ref, ln_ref,
                            out_ref):
    L = out_ref.shape[1]
    H = out_ref.shape[2]
    R = feat_ref.shape[1]

    def one_hot(ids_col, n):
        # ids_col: [L, 1] int32 -> [L, n] f32 one-hot (lane broadcast vs iota)
        iota = jax.lax.broadcasted_iota(jnp.int32, (ids_col.shape[0], n), 1)
        return (iota == ids_col).astype(jnp.float32)

    def layer_norm(x, g_row, b_row, eps=1e-12):
        mean = jnp.mean(x, axis=-1, keepdims=True)
        xc = x - mean
        var = jnp.mean(xc * xc, axis=-1, keepdims=True)
        return xc * jax.lax.rsqrt(var + eps) * g_row + b_row

    # --- text / position / token-type embedding gathers (one-hot @ table). ---
    words = jnp.dot(one_hot(wid_ref[0], wtab_ref.shape[0]), wtab_ref[...],
                    preferred_element_type=jnp.float32)
    poss = jnp.dot(one_hot(pid_ref[0], ptab_ref.shape[0]), ptab_ref[...],
                   preferred_element_type=jnp.float32)
    toks = jnp.dot(one_hot(tid_ref[0], ttab_ref.shape[0]), ttab_ref[...],
                   preferred_element_type=jnp.float32)
    emb = words + poss + toks                                   # [L, H] f32

    ln = ln_ref[...]                                            # [8, H] f32
    bias = bias_ref[...]                                        # [2, H] f32

    # --- image branch: bf16 feature projection (f32 acc) + LayerNorms. -------
    img = jnp.dot(feat_ref[0], w_img_ref[...],
                  preferred_element_type=jnp.float32) + bias[0:1, :]
    img = layer_norm(img, ln[0:1, :], ln[1:2, :])               # LayerNorm_feat

    loc = jnp.dot(loc_ref[0], w_loc_ref[...],
                  preferred_element_type=jnp.float32) + bias[1:2, :]
    loc = layer_norm(loc, ln[2:3, :], ln[3:4, :])               # LayerNorm_loc

    img = layer_norm(img + loc, ln[4:5, :], ln[5:6, :])         # LayerNorm_img
    # TODO(synk): dropout_img / dropout are identity at inference; training
    # mode would need pltpu.prng_seed + pltpu.prng_random_bits masking.

    # embeddings[:, 1:R+1] += img  -> place image branch at rows 1..R of [L,H]
    img_full = jnp.concatenate(
        [jnp.zeros((1, H), jnp.float32), img,
         jnp.zeros((L - R - 1, H), jnp.float32)], axis=0)
    emb = emb + img_full

    out = layer_norm(emb, ln[6:7, :], ln[7:8, :])               # final LayerNorm
    out_ref[0] = out.astype(out_ref.dtype)


def bert_embeddings_pallas(img_ids, img_loc, input_ids, token_type_ids, params):
    """Fused BertEmbeddings forward.

    img_ids:        [B, max_region+1, v_feature_size] region features.
    img_loc:        [B, max_region+1, 5] box locations.
    input_ids:      [B, 52] int token ids.
    token_type_ids: [B, 52] int segment ids (values < 3, +1 applied inside).
    """
    B, Rp1, V = img_ids.shape
    R = Rp1 - 1
    Lt = input_ids.shape[1]          # 52 in the original module
    Lv = R + 1
    L = Lv + Lt
    H = params["word_table"].shape[1]

    # ---- id bookkeeping (mirrors the torch index plumbing in forward) -------
    ids_v = jnp.full((B, Lv), 49, jnp.int32).at[:, 0].set(47)
    ids_t = input_ids.astype(jnp.int32).at[:, 0].set(48)
    word_ids = jnp.concatenate([ids_v, ids_t], axis=1)[..., None]      # [B,L,1]

    tok_v = jnp.zeros((B, Lv), jnp.int32)
    tok_t = token_type_ids.astype(jnp.int32) + 1
    tok_ids = jnp.concatenate([tok_v, tok_t], axis=1)[..., None]       # [B,L,1]

    pos_v = jnp.concatenate(
        [jnp.zeros((1,), jnp.int32), jnp.ones((Lv - 1,), jnp.int32)])
    pos_t = jnp.arange(Lt, dtype=jnp.int32) + 2
    pos_ids = jnp.concatenate([pos_v, pos_t])[None, :, None]           # [1,L,1]

    # TODO(synk): the torch branch that repeats text embeddings when
    # embeddings.size(0) != img_ids.size(0) is not supported; batches must match.

    # ---- image branch inputs: drop region 0, cast heavy matmul to bf16 ------
    feats = img_ids[:, 1:].astype(jnp.bfloat16)                        # [B,R,V]
    locs = img_loc[:, 1:].astype(jnp.float32)                          # [B,R,5]

    wtab = params["word_table"].astype(jnp.float32)                    # [50,H]
    ptab = params["pos_table"].astype(jnp.float32)                     # [54,H]
    ttab = params["tok_table"].astype(jnp.float32)                     # [4,H]
    w_img = params["w_img"].astype(jnp.bfloat16)                       # [V,H]
    w_loc = params["w_loc"].astype(jnp.float32)                        # [5,H]
    bias2 = jnp.stack([params["b_img"], params["b_loc"]]).astype(jnp.float32)
    ln8 = jnp.stack([
        params["ln_feat_g"], params["ln_feat_b"],
        params["ln_loc_g"], params["ln_loc_b"],
        params["ln_img_g"], params["ln_img_b"],
        params["ln_g"], params["ln_b"]]).astype(jnp.float32)           # [8,H]

    nw, npos, nt = wtab.shape[0], ptab.shape[0], ttab.shape[0]

    flops = 2 * B * L * H * (nw + npos + nt) + 2 * B * R * H * (V + 5)
    bytes_accessed = sum(int(a.size) * int(a.dtype.itemsize) for a in
                         (word_ids, tok_ids, pos_ids, feats, locs, wtab, ptab,
                          ttab, w_img, w_loc, bias2, ln8)) + B * L * H * 4

    in_specs = [
        pl.BlockSpec((1, L, 1), lambda b: (b, 0, 0)),    # word ids
        pl.BlockSpec((1, L, 1), lambda b: (b, 0, 0)),    # token type ids
        pl.BlockSpec((1, L, 1), lambda b: (0, 0, 0)),    # position ids (shared)
        pl.BlockSpec((1, R, V), lambda b: (b, 0, 0)),    # image features (bf16)
        pl.BlockSpec((1, R, 5), lambda b: (b, 0, 0)),    # image locations
        pl.BlockSpec((nw, H), lambda b: (0, 0)),         # word table (resident)
        pl.BlockSpec((npos, H), lambda b: (0, 0)),       # position table
        pl.BlockSpec((nt, H), lambda b: (0, 0)),         # token-type table
        pl.BlockSpec((V, H), lambda b: (0, 0)),          # W_img (bf16, resident)
        pl.BlockSpec((5, H), lambda b: (0, 0)),          # W_loc
        pl.BlockSpec((2, H), lambda b: (0, 0)),          # [b_img; b_loc]
        pl.BlockSpec((8, H), lambda b: (0, 0)),          # LayerNorm params
    ]
    out_spec = pl.BlockSpec((1, L, H), lambda b: (b, 0, 0))

    return pl.pallas_call(
        _bert_embeddings_kernel,
        out_shape=jax.ShapeDtypeStruct((B, L, H), jnp.float32),
        grid_spec=pl.GridSpec(grid=(B,), in_specs=in_specs, out_specs=out_spec),
        compiler_params=pltpu.CompilerParams(
            dimension_semantics=("parallel",)),
        cost_estimate=pl.CostEstimate(
            flops=int(flops),
            transcendentals=int(B * (L + 3 * R)),
            bytes_accessed=int(bytes_accessed)),
    )(word_ids, tok_ids, pos_ids, feats, locs,
      wtab, ptab, ttab, w_img, w_loc, bias2, ln8)


def make_params(key, hidden_size, v_feature_size):
    """Deterministic synthetic params mirroring the PyTorch module layout."""
    H = hidden_size
    ks = jax.random.split(key, 11)
    word_table = jax.random.normal(ks[0], (50, H), jnp.float32) * 0.02
    word_table = word_table.at[26].set(0.0)   # nn.Embedding padding_idx=26 row
    pos_table = jax.random.normal(ks[1], (54, H), jnp.float32) * 0.02
    tok_table = jax.random.normal(ks[2], (4, H), jnp.float32) * 0.02
    # Linear weights stored pre-transposed [in, out] for row-major MXU matmuls.
    w_img = jax.random.normal(ks[3], (v_feature_size, H), jnp.float32) * 0.02
    b_img = jax.random.normal(ks[4], (H,), jnp.float32) * 0.02
    w_loc = jax.random.normal(ks[5], (5, H), jnp.float32) * 0.02
    b_loc = jax.random.normal(ks[6], (H,), jnp.float32) * 0.02

    def ln_pair(k):
        kg, kb = jax.random.split(k)
        return (1.0 + 0.1 * jax.random.normal(kg, (H,), jnp.float32),
                0.1 * jax.random.normal(kb, (H,), jnp.float32))

    ln_feat_g, ln_feat_b = ln_pair(ks[7])
    ln_loc_g, ln_loc_b = ln_pair(ks[8])
    ln_img_g, ln_img_b = ln_pair(ks[9])
    ln_g, ln_b = ln_pair(ks[10])
    return dict(word_table=word_table, pos_table=pos_table, tok_table=tok_table,
                w_img=w_img, b_img=b_img, w_loc=w_loc, b_loc=b_loc,
                ln_feat_g=ln_feat_g, ln_feat_b=ln_feat_b,
                ln_loc_g=ln_loc_g, ln_loc_b=ln_loc_b,
                ln_img_g=ln_img_g, ln_img_b=ln_img_b,
                ln_g=ln_g, ln_b=ln_b)


def reference(img_ids, img_loc, input_ids, token_type_ids, params):
    """Pure-jnp f32 mirror of the PyTorch forward (use_layer_norm_feat=True,
    use_location_embed=True, dropout=identity)."""
    B, Rp1, _ = img_ids.shape
    R = Rp1 - 1
    Lt = input_ids.shape[1]
    Lv = R + 1

    ids_v = jnp.full((B, Lv), 49, jnp.int32).at[:, 0].set(47)
    ids_t = input_ids.astype(jnp.int32).at[:, 0].set(48)
    word_ids = jnp.concatenate([ids_v, ids_t], axis=1)
    tok_ids = jnp.concatenate(
        [jnp.zeros((B, Lv), jnp.int32),
         token_type_ids.astype(jnp.int32) + 1], axis=1)
    pos_ids = jnp.concatenate(
        [jnp.zeros((1,), jnp.int32), jnp.ones((Lv - 1,), jnp.int32),
         jnp.arange(Lt, dtype=jnp.int32) + 2])[None, :]

    def ln(x, g, b, eps=1e-12):
        m = jnp.mean(x, -1, keepdims=True)
        v = jnp.mean((x - m) ** 2, -1, keepdims=True)
        return (x - m) / jnp.sqrt(v + eps) * g + b

    emb = (params["word_table"][word_ids]
           + params["pos_table"][pos_ids]
           + params["tok_table"][tok_ids])

    img = img_ids[:, 1:] @ params["w_img"] + params["b_img"]
    img = ln(img, params["ln_feat_g"], params["ln_feat_b"])
    loc = img_loc[:, 1:] @ params["w_loc"] + params["b_loc"]
    loc = ln(loc, params["ln_loc_g"], params["ln_loc_b"])
    img = ln(img + loc, params["ln_img_g"], params["ln_img_b"])

    emb = emb.at[:, 1:R + 1].add(img)
    return ln(emb, params["ln_g"], params["ln_b"])


if __name__ == "__main__":
    B = 2
    H = 128            # hidden_size (lane-dense output)
    V = 64             # v_feature_size (small test size)
    max_region = 11    # -> L = (11 + 1) + 52 = 64
    Lt = 52            # max_seq_len hard-coded in the module

    key = jax.random.PRNGKey(0)
    k_feat, k_loc, k_ids, k_tok, k_par = jax.random.split(key, 5)
    img_ids = jax.random.normal(k_feat, (B, max_region + 1, V), jnp.float32)
    img_loc = jax.random.uniform(k_loc, (B, max_region + 1, 5), jnp.float32)
    input_ids = jax.random.randint(k_ids, (B, Lt), 0, 50, jnp.int32)
    token_type_ids = jax.random.randint(k_tok, (B, Lt), 0, 3, jnp.int32)
    params = make_params(k_par, H, V)

    out = bert_embeddings_pallas(img_ids, img_loc, input_ids, token_type_ids,
                                 params)
    out = jax.block_until_ready(out)

    ref = reference(img_ids, img_loc, input_ids, token_type_ids, params)
    assert out.shape == (B, max_region + 1 + Lt, H)
    max_err = float(jnp.max(jnp.abs(out - ref)))
    # image-feature projection runs in bf16 on the MXU (f32 accumulation), so
    # allow a small tolerance vs the pure-f32 reference.
    assert jnp.allclose(out, ref, atol=2e-2, rtol=2e-2), f"mismatch: {max_err}"
    print("KERNEL_OK")
</pallas_src>

<mosaic_0001>
module attributes {stable_mosaic.version = 11 : i64} {
  func.func @_bert_embeddings_kernel(%arg0: i32, %arg1: memref<1x64x1xi32, #tpu.memory_space<vmem>>, %arg2: memref<1x64x1xi32, #tpu.memory_space<vmem>>, %arg3: memref<1x64x1xi32, #tpu.memory_space<vmem>>, %arg4: memref<1x11x64xbf16, #tpu.memory_space<vmem>>, %arg5: memref<1x11x5xf32, #tpu.memory_space<vmem>>, %arg6: memref<50x128xf32, #tpu.memory_space<vmem>>, %arg7: memref<54x128xf32, #tpu.memory_space<vmem>>, %arg8: memref<4x128xf32, #tpu.memory_space<vmem>>, %arg9: memref<64x128xbf16, #tpu.memory_space<vmem>>, %arg10: memref<5x128xf32, #tpu.memory_space<vmem>>, %arg11: memref<2x128xf32, #tpu.memory_space<vmem>>, %arg12: memref<8x128xf32, #tpu.memory_space<vmem>>, %arg13: memref<1x64x128xf32, #tpu.memory_space<vmem>>) attributes {dimension_semantics = [#tpu.dimension_semantics<parallel>], iteration_bounds = array<i64: 2>, scalar_prefetch = 0 : i64, scratch_operands = 0 : i64, tpu.core_type = #tpu.core_type<tc>, window_params = [{transform_indices = @transform_0, window_bounds = array<i64: 1, 64, 1>}, {transform_indices = @transform_1, window_bounds = array<i64: 1, 64, 1>}, {pipeline_mode = #tpu.pipeline_mode<synchronous>, transform_indices = @transform_2, window_bounds = array<i64: 1, 64, 1>}, {transform_indices = @transform_3, window_bounds = array<i64: 1, 11, 64>}, {transform_indices = @transform_4, window_bounds = array<i64: 1, 11, 5>}, {pipeline_mode = #tpu.pipeline_mode<synchronous>, transform_indices = @transform_5, window_bounds = array<i64: 50, 128>}, {pipeline_mode = #tpu.pipeline_mode<synchronous>, transform_indices = @transform_6, window_bounds = array<i64: 54, 128>}, {pipeline_mode = #tpu.pipeline_mode<synchronous>, transform_indices = @transform_7, window_bounds = array<i64: 4, 128>}, {pipeline_mode = #tpu.pipeline_mode<synchronous>, transform_indices = @transform_8, window_bounds = array<i64: 64, 128>}, {pipeline_mode = #tpu.pipeline_mode<synchronous>, transform_indices = @transform_9, window_bounds = array<i64: 5, 128>}, {pipeline_mode = #tpu.pipeline_mode<synchronous>, transform_indices = @transform_10, window_bounds = array<i64: 2, 128>}, {pipeline_mode = #tpu.pipeline_mode<synchronous>, transform_indices = @transform_11, window_bounds = array<i64: 8, 128>}, {transform_indices = @transform_12, window_bounds = array<i64: 1, 64, 128>}]} {
    %c0 = arith.constant 0 : index
    %c0_0 = arith.constant 0 : index
    %c0_1 = arith.constant 0 : index
    %0 = vector.load %arg1[%c0, %c0_0, %c0_1] : memref<1x64x1xi32, #tpu.memory_space<vmem>>, vector<1x64x1xi32>
    %1 = vector.shape_cast %0 : vector<1x64x1xi32> to vector<64x1xi32>
    %2 = tpu.iota {dimensions = array<i32: 1>} : vector<64x50xi32>
    %3 = vector.broadcast %1 : vector<64x1xi32> to vector<64x50xi32>
    %4 = arith.cmpi eq, %2, %3 : vector<64x50xi32>
    %5 = arith.extui %4 : vector<64x50xi1> to vector<64x50xi32>
    %6 = arith.sitofp %5 : vector<64x50xi32> to vector<64x50xf32>
    %c0_2 = arith.constant 0 : index
    %c0_3 = arith.constant 0 : index
    %7 = vector.load %arg6[%c0_2, %c0_3] : memref<50x128xf32, #tpu.memory_space<vmem>>, vector<50x128xf32>
    %cst = arith.constant dense<0.000000e+00> : vector<64x128xf32>
    %8 = tpu.matmul %6, %7, %cst {dimension_numbers = #tpu.dot_dimension_numbers<[1], [0], [0], [1], [0, 0, 1, 1], [], []>} : vector<64x50xf32>, vector<50x128xf32>, vector<64x128xf32> -> vector<64x128xf32>
    %c0_4 = arith.constant 0 : index
    %c0_5 = arith.constant 0 : index
    %c0_6 = arith.constant 0 : index
    %9 = vector.load %arg3[%c0_4, %c0_5, %c0_6] : memref<1x64x1xi32, #tpu.memory_space<vmem>>, vector<1x64x1xi32>
    %10 = vector.shape_cast %9 : vector<1x64x1xi32> to vector<64x1xi32>
    %11 = tpu.iota {dimensions = array<i32: 1>} : vector<64x54xi32>
    %12 = vector.broadcast %10 : vector<64x1xi32> to vector<64x54xi32>
    %13 = arith.cmpi eq, %11, %12 : vector<64x54xi32>
    %14 = arith.extui %13 : vector<64x54xi1> to vector<64x54xi32>
    %15 = arith.sitofp %14 : vector<64x54xi32> to vector<64x54xf32>
    %c0_7 = arith.constant 0 : index
    %c0_8 = arith.constant 0 : index
    %16 = vector.load %arg7[%c0_7, %c0_8] : memref<54x128xf32, #tpu.memory_space<vmem>>, vector<54x128xf32>
    %cst_9 = arith.constant dense<0.000000e+00> : vector<64x128xf32>
    %17 = tpu.matmul %15, %16, %cst_9 {dimension_numbers = #tpu.dot_dimension_numbers<[1], [0], [0], [1], [0, 0, 1, 1], [], []>} : vector<64x54xf32>, vector<54x128xf32>, vector<64x128xf32> -> vector<64x128xf32>
    %c0_10 = arith.constant 0 : index
    %c0_11 = arith.constant 0 : index
    %c0_12 = arith.constant 0 : index
    %18 = vector.load %arg2[%c0_10, %c0_11, %c0_12] : memref<1x64x1xi32, #tpu.memory_space<vmem>>, vector<1x64x1xi32>
    %19 = vector.shape_cast %18 : vector<1x64x1xi32> to vector<64x1xi32>
    %20 = tpu.iota {dimensions = array<i32: 1>} : vector<64x4xi32>
    %21 = vector.broadcast %19 : vector<64x1xi32> to vector<64x4xi32>
    %22 = arith.cmpi eq, %20, %21 : vector<64x4xi32>
    %23 = arith.extui %22 : vector<64x4xi1> to vector<64x4xi32>
    %24 = arith.sitofp %23 : vector<64x4xi32> to vector<64x4xf32>
    %c0_13 = arith.constant 0 : index
    %c0_14 = arith.constant 0 : index
    %25 = vector.load %arg8[%c0_13, %c0_14] : memref<4x128xf32, #tpu.memory_space<vmem>>, vector<4x128xf32>
    %cst_15 = arith.constant dense<0.000000e+00> : vector<64x128xf32>
    %26 = tpu.matmul %24, %25, %cst_15 {dimension_numbers = #tpu.dot_dimension_numbers<[1], [0], [0], [1], [0, 0, 1, 1], [], []>} : vector<64x4xf32>, vector<4x128xf32>, vector<64x128xf32> -> vector<64x128xf32>
    %27 = arith.addf %8, %17 : vector<64x128xf32>
    %28 = arith.addf %27, %26 : vector<64x128xf32>
    %c0_16 = arith.constant 0 : index
    %c0_17 = arith.constant 0 : index
    %29 = vector.load %arg12[%c0_16, %c0_17] : memref<8x128xf32, #tpu.memory_space<vmem>>, vector<8x128xf32>
    %c0_18 = arith.constant 0 : index
    %c0_19 = arith.constant 0 : index
    %30 = vector.load %arg11[%c0_18, %c0_19] : memref<2x128xf32, #tpu.memory_space<vmem>>, vector<2x128xf32>
    %c0_20 = arith.constant 0 : index
    %c0_21 = arith.constant 0 : index
    %c0_22 = arith.constant 0 : index
    %31 = vector.load %arg4[%c0_20, %c0_21, %c0_22] : memref<1x11x64xbf16, #tpu.memory_space<vmem>>, vector<1x11x64xbf16>
    %32 = vector.shape_cast %31 : vector<1x11x64xbf16> to vector<11x64xbf16>
    %c0_23 = arith.constant 0 : index
    %c0_24 = arith.constant 0 : index
    %33 = vector.load %arg9[%c0_23, %c0_24] : memref<64x128xbf16, #tpu.memory_space<vmem>>, vector<64x128xbf16>
    %cst_25 = arith.constant dense<0.000000e+00> : vector<11x128xf32>
    %34 = tpu.matmul %32, %33, %cst_25 {dimension_numbers = #tpu.dot_dimension_numbers<[1], [0], [0], [1], [0, 0, 1, 1], [], []>} : vector<11x64xbf16>, vector<64x128xbf16>, vector<11x128xf32> -> vector<11x128xf32>
    %35 = vector.extract_strided_slice %30 {offsets = [0, 0], sizes = [1, 128], strides = [1, 1]} : vector<2x128xf32> to vector<1x128xf32>
    %36 = vector.broadcast %35 : vector<1x128xf32> to vector<11x128xf32>
    %37 = arith.addf %34, %36 : vector<11x128xf32>
    %38 = vector.extract_strided_slice %29 {offsets = [0, 0], sizes = [1, 128], strides = [1, 1]} : vector<8x128xf32> to vector<1x128xf32>
    %39 = vector.extract_strided_slice %29 {offsets = [1, 0], sizes = [1, 128], strides = [1, 1]} : vector<8x128xf32> to vector<1x128xf32>
    %cst_26 = arith.constant dense<0.000000e+00> : vector<11xf32>
    %40 = vector.multi_reduction <add>, %37, %cst_26 [1] : vector<11x128xf32> to vector<11xf32>
    %41 = vector.shape_cast %40 : vector<11xf32> to vector<11x1xf32>
    %cst_27 = arith.constant 1.280000e+02 : f32
    %42 = vector.broadcast %cst_27 : f32 to vector<11x1xf32>
    %43 = arith.divf %41, %42 : vector<11x1xf32>
    %44 = vector.broadcast %43 : vector<11x1xf32> to vector<11x128xf32>
    %45 = arith.subf %37, %44 : vector<11x128xf32>
    %46 = arith.mulf %45, %45 : vector<11x128xf32>
    %cst_28 = arith.constant dense<0.000000e+00> : vector<11xf32>
    %47 = vector.multi_reduction <add>, %46, %cst_28 [1] : vector<11x128xf32> to vector<11xf32>
    %48 = vector.shape_cast %47 : vector<11xf32> to vector<11x1xf32>
    %cst_29 = arith.constant 1.280000e+02 : f32
    %49 = vector.broadcast %cst_29 : f32 to vector<11x1xf32>
    %50 = arith.divf %48, %49 : vector<11x1xf32>
    %cst_30 = arith.constant 9.99999996E-13 : f32
    %51 = vector.broadcast %cst_30 : f32 to vector<11x1xf32>
    %52 = arith.addf %50, %51 : vector<11x1xf32>
    %53 = math.rsqrt %52 : vector<11x1xf32>
    %54 = vector.broadcast %53 : vector<11x1xf32> to vector<11x128xf32>
    %55 = arith.mulf %45, %54 : vector<11x128xf32>
    %56 = vector.broadcast %38 : vector<1x128xf32> to vector<11x128xf32>
    %57 = arith.mulf %55, %56 : vector<11x128xf32>
    %58 = vector.broadcast %39 : vector<1x128xf32> to vector<11x128xf32>
    %59 = arith.addf %57, %58 : vector<11x128xf32>
    %c0_31 = arith.constant 0 : index
    %c0_32 = arith.constant 0 : index
    %c0_33 = arith.constant 0 : index
    %60 = vector.load %arg5[%c0_31, %c0_32, %c0_33] : memref<1x11x5xf32, #tpu.memory_space<vmem>>, vector<1x11x5xf32>
    %61 = vector.shape_cast %60 : vector<1x11x5xf32> to vector<11x5xf32>
    %c0_34 = arith.constant 0 : index
    %c0_35 = arith.constant 0 : index
    %62 = vector.load %arg10[%c0_34, %c0_35] : memref<5x128xf32, #tpu.memory_space<vmem>>, vector<5x128xf32>
    %cst_36 = arith.constant dense<0.000000e+00> : vector<11x128xf32>
    %63 = tpu.matmul %61, %62, %cst_36 {dimension_numbers = #tpu.dot_dimension_numbers<[1], [0], [0], [1], [0, 0, 1, 1], [], []>} : vector<11x5xf32>, vector<5x128xf32>, vector<11x128xf32> -> vector<11x128xf32>
    %64 = vector.extract_strided_slice %30 {offsets = [1, 0], sizes = [1, 128], strides = [1, 1]} : vector<2x128xf32> to vector<1x128xf32>
    %65 = vector.broadcast %64 : vector<1x128xf32> to vector<11x128xf32>
    %66 = arith.addf %63, %65 : vector<11x128xf32>
    %67 = vector.extract_strided_slice %29 {offsets = [2, 0], sizes = [1, 128], strides = [1, 1]} : vector<8x128xf32> to vector<1x128xf32>
    %68 = vector.extract_strided_slice %29 {offsets = [3, 0], sizes = [1, 128], strides = [1, 1]} : vector<8x128xf32> to vector<1x128xf32>
    %cst_37 = arith.constant dense<0.000000e+00> : vector<11xf32>
    %69 = vector.multi_reduction <add>, %66, %cst_37 [1] : vector<11x128xf32> to vector<11xf32>
    %70 = vector.shape_cast %69 : vector<11xf32> to vector<11x1xf32>
    %cst_38 = arith.constant 1.280000e+02 : f32
    %71 = vector.broadcast %cst_38 : f32 to vector<11x1xf32>
    %72 = arith.divf %70, %71 : vector<11x1xf32>
    %73 = vector.broadcast %72 : vector<11x1xf32> to vector<11x128xf32>
    %74 = arith.subf %66, %73 : vector<11x128xf32>
    %75 = arith.mulf %74, %74 : vector<11x128xf32>
    %cst_39 = arith.constant dense<0.000000e+00> : vector<11xf32>
    %76 = vector.multi_reduction <add>, %75, %cst_39 [1] : vector<11x128xf32> to vector<11xf32>
    %77 = vector.shape_cast %76 : vector<11xf32> to vector<11x1xf32>
    %cst_40 = arith.constant 1.280000e+02 : f32
    %78 = vector.broadcast %cst_40 : f32 to vector<11x1xf32>
    %79 = arith.divf %77, %78 : vector<11x1xf32>
    %cst_41 = arith.constant 9.99999996E-13 : f32
    %80 = vector.broadcast %cst_41 : f32 to vector<11x1xf32>
    %81 = arith.addf %79, %80 : vector<11x1xf32>
    %82 = math.rsqrt %81 : vector<11x1xf32>
    %83 = vector.broadcast %82 : vector<11x1xf32> to vector<11x128xf32>
    %84 = arith.mulf %74, %83 : vector<11x128xf32>
    %85 = vector.broadcast %67 : vector<1x128xf32> to vector<11x128xf32>
    %86 = arith.mulf %84, %85 : vector<11x128xf32>
    %87 = vector.broadcast %68 : vector<1x128xf32> to vector<11x128xf32>
    %88 = arith.addf %86, %87 : vector<11x128xf32>
    %89 = arith.addf %59, %88 : vector<11x128xf32>
    %90 = vector.extract_strided_slice %29 {offsets = [4, 0], sizes = [1, 128], strides = [1, 1]} : vector<8x128xf32> to vector<1x128xf32>
    %91 = vector.extract_strided_slice %29 {offsets = [5, 0], sizes = [1, 128], strides = [1, 1]} : vector<8x128xf32> to vector<1x128xf32>
    %cst_42 = arith.constant dense<0.000000e+00> : vector<11xf32>
    %92 = vector.multi_reduction <add>, %89, %cst_42 [1] : vector<11x128xf32> to vector<11xf32>
    %93 = vector.shape_cast %92 : vector<11xf32> to vector<11x1xf32>
    %cst_43 = arith.constant 1.280000e+02 : f32
    %94 = vector.broadcast %cst_43 : f32 to vector<11x1xf32>
    %95 = arith.divf %93, %94 : vector<11x1xf32>
    %96 = vector.broadcast %95 : vector<11x1xf32> to vector<11x128xf32>
    %97 = arith.subf %89, %96 : vector<11x128xf32>
    %98 = arith.mulf %97, %97 : vector<11x128xf32>
    %cst_44 = arith.constant dense<0.000000e+00> : vector<11xf32>
    %99 = vector.multi_reduction <add>, %98, %cst_44 [1] : vector<11x128xf32> to vector<11xf32>
    %100 = vector.shape_cast %99 : vector<11xf32> to vector<11x1xf32>
    %cst_45 = arith.constant 1.280000e+02 : f32
    %101 = vector.broadcast %cst_45 : f32 to vector<11x1xf32>
    %102 = arith.divf %100, %101 : vector<11x1xf32>
    %cst_46 = arith.constant 9.99999996E-13 : f32
    %103 = vector.broadcast %cst_46 : f32 to vector<11x1xf32>
    %104 = arith.addf %102, %103 : vector<11x1xf32>
    %105 = math.rsqrt %104 : vector<11x1xf32>
    %106 = vector.broadcast %105 : vector<11x1xf32> to vector<11x128xf32>
    %107 = arith.mulf %97, %106 : vector<11x128xf32>
    %108 = vector.broadcast %90 : vector<1x128xf32> to vector<11x128xf32>
    %109 = arith.mulf %107, %108 : vector<11x128xf32>
    %110 = vector.broadcast %91 : vector<1x128xf32> to vector<11x128xf32>
    %111 = arith.addf %109, %110 : vector<11x128xf32>
    %cst_47 = arith.constant 0.000000e+00 : f32
    %112 = vector.broadcast %cst_47 : f32 to vector<1x128xf32>
    %cst_48 = arith.constant 0.000000e+00 : f32
    %113 = vector.broadcast %cst_48 : f32 to vector<52x128xf32>
    %114 = tpu.concatenate %112, %111, %113 in 0 : vector<1x128xf32>, vector<11x128xf32>, vector<52x128xf32> -> vector<64x128xf32>
    %115 = arith.addf %28, %114 : vector<64x128xf32>
    %116 = vector.extract_strided_slice %29 {offsets = [6, 0], sizes = [1, 128], strides = [1, 1]} : vector<8x128xf32> to vector<1x128xf32>
    %117 = vector.extract_strided_slice %29 {offsets = [7, 0], sizes = [1, 128], strides = [1, 1]} : vector<8x128xf32> to vector<1x128xf32>
    %cst_49 = arith.constant dense<0.000000e+00> : vector<64xf32>
    %118 = vector.multi_reduction <add>, %115, %cst_49 [1] : vector<64x128xf32> to vector<64xf32>
    %119 = vector.shape_cast %118 : vector<64xf32> to vector<64x1xf32>
    %cst_50 = arith.constant 1.280000e+02 : f32
    %120 = vector.broadcast %cst_50 : f32 to vector<64x1xf32>
    %121 = arith.divf %119, %120 : vector<64x1xf32>
    %122 = vector.broadcast %121 : vector<64x1xf32> to vector<64x128xf32>
    %123 = arith.subf %115, %122 : vector<64x128xf32>
    %124 = arith.mulf %123, %123 : vector<64x128xf32>
    %cst_51 = arith.constant dense<0.000000e+00> : vector<64xf32>
    %125 = vector.multi_reduction <add>, %124, %cst_51 [1] : vector<64x128xf32> to vector<64xf32>
    %126 = vector.shape_cast %125 : vector<64xf32> to vector<64x1xf32>
    %cst_52 = arith.constant 1.280000e+02 : f32
    %127 = vector.broadcast %cst_52 : f32 to vector<64x1xf32>
    %128 = arith.divf %126, %127 : vector<64x1xf32>
    %cst_53 = arith.constant 9.99999996E-13 : f32
    %129 = vector.broadcast %cst_53 : f32 to vector<64x1xf32>
    %130 = arith.addf %128, %129 : vector<64x1xf32>
    %131 = math.rsqrt %130 : vector<64x1xf32>
    %132 = vector.broadcast %131 : vector<64x1xf32> to vector<64x128xf32>
    %133 = arith.mulf %123, %132 : vector<64x128xf32>
    %134 = vector.broadcast %116 : vector<1x128xf32> to vector<64x128xf32>
    %135 = arith.mulf %133, %134 : vector<64x128xf32>
    %136 = vector.broadcast %117 : vector<1x128xf32> to vector<64x128xf32>
    %137 = arith.addf %135, %136 : vector<64x128xf32>
    %c0_54 = arith.constant 0 : index
    %c0_55 = arith.constant 0 : index
    %c0_56 = arith.constant 0 : index
    %138 = vector.load %arg13[%c0_54, %c0_55, %c0_56] : memref<1x64x128xf32, #tpu.memory_space<vmem>>, vector<1x64x128xf32>
    %139 = vector.shape_cast %138 : vector<1x64x128xf32> to vector<64x128xf32>
    %140 = vector.shape_cast %137 : vector<64x128xf32> to vector<1x64x128xf32>
    tpu.vector_store %arg13[%c0_54, %c0_55, %c0_56], %140 {strides = array<i32>} : memref<1x64x128xf32, #tpu.memory_space<vmem>>, vector<1x64x128xf32>,
    return
  }
  func.func @transform_0(%arg0: i32) -> (i32, i32, i32) {
    %c0_i32 = arith.constant 0 : i32
    %c0_i32_0 = arith.constant 0 : i32
    %c0_i32_1 = arith.constant 0 : i32
    return %arg0, %c0_i32, %c0_i32_0 : i32, i32, i32
  }
  func.func @transform_1(%arg0: i32) -> (i32, i32, i32) {
    %c0_i32 = arith.constant 0 : i32
    %c0_i32_0 = arith.constant 0 : i32
    %c0_i32_1 = arith.constant 0 : i32
    return %arg0, %c0_i32, %c0_i32_0 : i32, i32, i32
  }
  func.func @transform_2(%arg0: i32) -> (i32, i32, i32) {
    %c0_i32 = arith.constant 0 : i32
    %c0_i32_0 = arith.constant 0 : i32
    %c0_i32_1 = arith.constant 0 : i32
    %c0_i32_2 = arith.constant 0 : i32
    return %c0_i32, %c0_i32_0, %c0_i32_1 : i32, i32, i32
  }
  func.func @transform_3(%arg0: i32) -> (i32, i32, i32) {
    %c0_i32 = arith.constant 0 : i32
    %c0_i32_0 = arith.constant 0 : i32
    %c0_i32_1 = arith.constant 0 : i32
    return %arg0, %c0_i32, %c0_i32_0 : i32, i32, i32
  }
  func.func @transform_4(%arg0: i32) -> (i32, i32, i32) {
    %c0_i32 = arith.constant 0 : i32
    %c0_i32_0 = arith.constant 0 : i32
    %c0_i32_1 = arith.constant 0 : i32
    return %arg0, %c0_i32, %c0_i32_0 : i32, i32, i32
  }
  func.func @transform_5(%arg0: i32) -> (i32, i32) {
    %c0_i32 = arith.constant 0 : i32
    %c0_i32_0 = arith.constant 0 : i32
    %c0_i32_1 = arith.constant 0 : i32
    return %c0_i32, %c0_i32_0 : i32, i32
  }
  func.func @transform_6(%arg0: i32) -> (i32, i32) {
    %c0_i32 = arith.constant 0 : i32
    %c0_i32_0 = arith.constant 0 : i32
    %c0_i32_1 = arith.constant 0 : i32
    return %c0_i32, %c0_i32_0 : i32, i32
  }
  func.func @transform_7(%arg0: i32) -> (i32, i32) {
    %c0_i32 = arith.constant 0 : i32
    %c0_i32_0 = arith.constant 0 : i32
    %c0_i32_1 = arith.constant 0 : i32
    return %c0_i32, %c0_i32_0 : i32, i32
  }
  func.func @transform_8(%arg0: i32) -> (i32, i32) {
    %c0_i32 = arith.constant 0 : i32
    %c0_i32_0 = arith.constant 0 : i32
    %c0_i32_1 = arith.constant 0 : i32
    return %c0_i32, %c0_i32_0 : i32, i32
  }
  func.func @transform_9(%arg0: i32) -> (i32, i32) {
    %c0_i32 = arith.constant 0 : i32
    %c0_i32_0 = arith.constant 0 : i32
    %c0_i32_1 = arith.constant 0 : i32
    return %c0_i32, %c0_i32_0 : i32, i32
  }
  func.func @transform_10(%arg0: i32) -> (i32, i32) {
    %c0_i32 = arith.constant 0 : i32
    %c0_i32_0 = arith.constant 0 : i32
    %c0_i32_1 = arith.constant 0 : i32
    return %c0_i32, %c0_i32_0 : i32, i32
  }
  func.func @transform_11(%arg0: i32) -> (i32, i32) {
    %c0_i32 = arith.constant 0 : i32
    %c0_i32_0 = arith.constant 0 : i32
    %c0_i32_1 = arith.constant 0 : i32
    return %c0_i32, %c0_i32_0 : i32, i32
  }
  func.func @transform_12(%arg0: i32) -> (i32, i32, i32) {
    %c0_i32 = arith.constant 0 : i32
    %c0_i32_0 = arith.constant 0 : i32
    %c0_i32_1 = arith.constant 0 : i32
    return %arg0, %c0_i32, %c0_i32_0 : i32, i32, i32
  }
}

</mosaic_0001>

<llo_original>
// kernel: tpu_custom_call.1
$region0: #{tpu_custom_call.1}
  #allocation0 [shape = 'u32[]', space=smem, size = 0x4, offset = 0x4, fixed_abs, tag = 'smem constant byte address 0x4 - core index']
  #allocation1 [shape = 'u32[144,128]{1,0:T(1,128)}', space=vmem, size = 0x12000, scoped, tag = 'internal scratch']
  %s0 = inlined_call_operand.vmem [shape: s32[2,64,1], index: 0, kind: input, shape index: {}]
  %s1 = inlined_call_operand.vmem [shape: s32[2,64,1], index: 1, kind: input, shape index: {}]
  %s2 = inlined_call_operand.vmem [shape: s32[1,64,1], index: 2, kind: input, shape index: {}]
  %s3 = inlined_call_operand.vmem [shape: bf16[2,11,64], index: 3, kind: input, shape index: {}]
  %s4 = inlined_call_operand.vmem [shape: f32[2,11,5], index: 4, kind: input, shape index: {}]
  %s5 = inlined_call_operand.vmem [shape: f32[50,128], index: 5, kind: input, shape index: {}]
  %s6 = inlined_call_operand.vmem [shape: f32[54,128], index: 6, kind: input, shape index: {}]
  %s7 = inlined_call_operand.vmem [shape: f32[4,128], index: 7, kind: input, shape index: {}]
  %s8 = inlined_call_operand.vmem [shape: bf16[64,128], index: 8, kind: input, shape index: {}]
  %s9 = inlined_call_operand.vmem [shape: f32[5,128], index: 9, kind: input, shape index: {}]
  %s10 = inlined_call_operand.vmem [shape: f32[2,128], index: 10, kind: input, shape index: {}]
  %s11 = inlined_call_operand.vmem [shape: f32[8,128], index: 11, kind: input, shape index: {}]
  %s12 = inlined_call_operand.hbm [shape: f32[2,64,128], index: 12, kind: output, shape index: {}]
  %s13 = sld [smem:[#allocation0]]
  $region81: #{tpu_custom_call.1} parent=0
    _
  %s15 = ssub.s32 1, %s13
  %s16 = scalar_select 0, %s15, %s13
  $region1: #{tpu_custom_call.1} parent=0
    #allocation2 [shape = 'u8[65536]{0}', space=vmem, size = 0x10000, scoped, tag = 'output window, operand 0']
    #allocation3 [shape = 's32[2]{0}', space=sflag, size = 0x8, scoped, tag = 'scoped memory for tpu_custom_call.1']
    %17 = vsyncpa [#allocation3], 0
    %s18 = scalar_lea.sflag [#allocation3], 1
    %19 = vsyncpa %s18, 0
    loop: start=0, step=1, limit=4
    $region2: #{tpu_custom_call.1} parent=1 // loop_pre_header
      _
    $region3: #{tpu_custom_call.1} parent=1 // loop_header
      %s21 = sphi 0, %s25
      %p22 = scmp.ge.s32.totalorder %s21, 4
      %s31 = sphi 0, %s33
      %s34 = sphi 0, %s31
      %s35 = sphi 0, %s34
      %s51 = sphi 0, %s35
      %s57 = sphi 0, %s59
      %s60 = sphi 0, %s57
      %s61 = sphi 0, %s60
      %s77 = sphi 0, %s61
      %s81 = sphi 0, %s81
      %s83 = sphi 0, %s81
      %s84 = sphi 0, %s83
      %s98 = sphi 0, %s84
      %s104 = sphi 0, %s106
      %s107 = sphi 0, %s104
      %s108 = sphi 0, %s107
      %s124 = sphi 0, %s108
      %s130 = sphi 0, %s132
      %s133 = sphi 0, %s130
      %s134 = sphi 0, %s133
      %s150 = sphi 0, %s134
      %s154 = sphi 0, %s154
      %s156 = sphi 0, %s154
      %s157 = sphi 0, %s156
      %s171 = sphi 0, %s157
      %s175 = sphi 0, %s175
      %s177 = sphi 0, %s175
      %s178 = sphi 0, %s177
      %s192 = sphi 0, %s178
      %s196 = sphi 0, %s196
      %s198 = sphi 0, %s196
      %s199 = sphi 0, %s198
      %s213 = sphi 0, %s199
      %s217 = sphi 0, %s217
      %s219 = sphi 0, %s217
      %s220 = sphi 0, %s219
      %s234 = sphi 0, %s220
      %s238 = sphi 0, %s238
      %s240 = sphi 0, %s238
      %s241 = sphi 0, %s240
      %s255 = sphi 0, %s241
      %s259 = sphi 0, %s259
      %s261 = sphi 0, %s259
      %s262 = sphi 0, %s261
      %s276 = sphi 0, %s262
      %s280 = sphi 0, %s280
      %s282 = sphi 0, %s280
      %s283 = sphi 0, %s282
      %s297 = sphi 0, %s283
      %s303 = sphi 0, %s305
      %s306 = sphi 0, %s303
      %s307 = sphi 0, %s306
      %s323 = sphi 0, %s307
    $region4: #{tpu_custom_call.1} parent=1 // loop_header_branch
      %24 = sbr.rel (%p22) target = $region8
    $region5: #{tpu_custom_call.1} parent=1 // loop_body
      %s26 = ssub.s32 %s21, 1
      %s27 = ssub.s32 %s21, 2
      %s28 = sadd.s32 %s21, 1
      %s29 = ssub.s32 %s21, %s28
      %p30 = scmp.eq.s32.totalorder %s29, 0
      %s32 = sadd.s32 %s31, 1
      %s33 = scalar_select %p30, %s31, %s32
      %p36 = pneg %p30
      %p37 = scmp.eq.s32.totalorder %s21, 1
      %p38 = por %p36, %p37
      %p39 = scmp.ne.s32.totalorder %s31, %s34
      %p40 = scmp.eq.s32.totalorder %s21, 0
      %p41 = por %p39, %p40
      %p42 = scmp.ne.s32.totalorder %s31, %s34
      %p43 = scmp.eq.s32.totalorder %s26, 1
      %p44 = por %p42, %p43
      %p45 = scmp.ne.s32.totalorder %s34, %s35
      %p46 = scmp.eq.s32.totalorder %s26, 0
      %p47 = por %p45, %p46
      %p48 = scmp.ne.s32.totalorder %s34, %s35
      %p49 = scmp.eq.s32.totalorder %s27, 1
      %p50 = por %p48, %p49
      %p52 = scmp.ne.s32.totalorder %s35, %s51
      %p53 = scmp.eq.s32.totalorder %s27, 0
      %p54 = por %p52, %p53
      %s55 = ssub.s32 %s21, %s28
      %p56 = scmp.eq.s32.totalorder %s55, 0
      %s58 = sadd.s32 %s57, 1
      %s59 = scalar_select %p56, %s57, %s58
      %p62 = pneg %p56
      %p63 = scmp.eq.s32.totalorder %s21, 1
      %p64 = por %p62, %p63
      %p65 = scmp.ne.s32.totalorder %s57, %s60
      %p66 = scmp.eq.s32.totalorder %s21, 0
      %p67 = por %p65, %p66
      %p68 = scmp.ne.s32.totalorder %s57, %s60
      %p69 = scmp.eq.s32.totalorder %s26, 1
      %p70 = por %p68, %p69
      %p71 = scmp.ne.s32.totalorder %s60, %s61
      %p72 = scmp.eq.s32.totalorder %s26, 0
      %p73 = por %p71, %p72
      %p74 = scmp.ne.s32.totalorder %s60, %s61
      %p75 = scmp.eq.s32.totalorder %s27, 1
      %p76 = por %p74, %p75
      %p78 = scmp.ne.s32.totalorder %s61, %s77
      %p79 = scmp.eq.s32.totalorder %s27, 0
      %p80 = por %p78, %p79
      %s82 = sadd.s32 %s81, 1
      %p85 = scmp.eq.s32.totalorder %s21, 1
      %p86 = scmp.ne.s32.totalorder %s81, %s83
      %p87 = scmp.eq.s32.totalorder %s21, 0
      %p88 = por %p86, %p87
      %p89 = scmp.ne.s32.totalorder %s81, %s83
      %p90 = scmp.eq.s32.totalorder %s26, 1
      %p91 = por %p89, %p90
      %p92 = scmp.ne.s32.totalorder %s83, %s84
      %p93 = scmp.eq.s32.totalorder %s26, 0
      %p94 = por %p92, %p93
      %p95 = scmp.ne.s32.totalorder %s83, %s84
      %p96 = scmp.eq.s32.totalorder %s27, 1
      %p97 = por %p95, %p96
      %p99 = scmp.ne.s32.totalorder %s84, %s98
      %p100 = scmp.eq.s32.totalorder %s27, 0
      %p101 = por %p99, %p100
      %s102 = ssub.s32 %s21, %s28
      %p103 = scmp.eq.s32.totalorder %s102, 0
      %s105 = sadd.s32 %s104, 1
      %s106 = scalar_select %p103, %s104, %s105
      %p109 = pneg %p103
      %p110 = scmp.eq.s32.totalorder %s21, 1
      %p111 = por %p109, %p110
      %p112 = scmp.ne.s32.totalorder %s104, %s107
      %p113 = scmp.eq.s32.totalorder %s21, 0
      %p114 = por %p112, %p113
      %p115 = scmp.ne.s32.totalorder %s104, %s107
      %p116 = scmp.eq.s32.totalorder %s26, 1
      %p117 = por %p115, %p116
      %p118 = scmp.ne.s32.totalorder %s107, %s108
      %p119 = scmp.eq.s32.totalorder %s26, 0
      %p120 = por %p118, %p119
      %p121 = scmp.ne.s32.totalorder %s107, %s108
      %p122 = scmp.eq.s32.totalorder %s27, 1
      %p123 = por %p121, %p122
      %p125 = scmp.ne.s32.totalorder %s108, %s124
      %p126 = scmp.eq.s32.totalorder %s27, 0
      %p127 = por %p125, %p126
      %s128 = ssub.s32 %s21, %s28
      %p129 = scmp.eq.s32.totalorder %s128, 0
      %s131 = sadd.s32 %s130, 1
      %s132 = scalar_select %p129, %s130, %s131
      %p135 = pneg %p129
      %p136 = scmp.eq.s32.totalorder %s21, 1
      %p137 = por %p135, %p136
      %p138 = scmp.ne.s32.totalorder %s130, %s133
      %p139 = scmp.eq.s32.totalorder %s21, 0
      %p140 = por %p138, %p139
      %p141 = scmp.ne.s32.totalorder %s130, %s133
      %p142 = scmp.eq.s32.totalorder %s26, 1
      %p143 = por %p141, %p142
      %p144 = scmp.ne.s32.totalorder %s133, %s134
      %p145 = scmp.eq.s32.totalorder %s26, 0
      %p146 = por %p144, %p145
      %p147 = scmp.ne.s32.totalorder %s133, %s134
      %p148 = scmp.eq.s32.totalorder %s27, 1
      %p149 = por %p147, %p148
      %p151 = scmp.ne.s32.totalorder %s134, %s150
      %p152 = scmp.eq.s32.totalorder %s27, 0
      %p153 = por %p151, %p152
      %s155 = sadd.s32 %s154, 1
      %p158 = scmp.eq.s32.totalorder %s21, 1
      %p159 = scmp.ne.s32.totalorder %s154, %s156
      %p160 = scmp.eq.s32.totalorder %s21, 0
      %p161 = por %p159, %p160
      %p162 = scmp.ne.s32.totalorder %s154, %s156
      %p163 = scmp.eq.s32.totalorder %s26, 1
      %p164 = por %p162, %p163
      %p165 = scmp.ne.s32.totalorder %s156, %s157
      %p166 = scmp.eq.s32.totalorder %s26, 0
      %p167 = por %p165, %p166
      %p168 = scmp.ne.s32.totalorder %s156, %s157
      %p169 = scmp.eq.s32.totalorder %s27, 1
      %p170 = por %p168, %p169
      %p172 = scmp.ne.s32.totalorder %s157, %s171
      %p173 = scmp.eq.s32.totalorder %s27, 0
      %p174 = por %p172, %p173
      %s176 = sadd.s32 %s175, 1
      %p179 = scmp.eq.s32.totalorder %s21, 1
      %p180 = scmp.ne.s32.totalorder %s175, %s177
      %p181 = scmp.eq.s32.totalorder %s21, 0
      %p182 = por %p180, %p181
      %p183 = scmp.ne.s32.totalorder %s175, %s177
      %p184 = scmp.eq.s32.totalorder %s26, 1
      %p185 = por %p183, %p184
      %p186 = scmp.ne.s32.totalorder %s177, %s178
      %p187 = scmp.eq.s32.totalorder %s26, 0
      %p188 = por %p186, %p187
      %p189 = scmp.ne.s32.totalorder %s177, %s178
      %p190 = scmp.eq.s32.totalorder %s27, 1
      %p191 = por %p189, %p190
      %p193 = scmp.ne.s32.totalorder %s178, %s192
      %p194 = scmp.eq.s32.totalorder %s27, 0
      %p195 = por %p193, %p194
      %s197 = sadd.s32 %s196, 1
      %p200 = scmp.eq.s32.totalorder %s21, 1
      %p201 = scmp.ne.s32.totalorder %s196, %s198
      %p202 = scmp.eq.s32.totalorder %s21, 0
      %p203 = por %p201, %p202
      %p204 = scmp.ne.s32.totalorder %s196, %s198
      %p205 = scmp.eq.s32.totalorder %s26, 1
      %p206 = por %p204, %p205
      %p207 = scmp.ne.s32.totalorder %s198, %s199
      %p208 = scmp.eq.s32.totalorder %s26, 0
      %p209 = por %p207, %p208
      %p210 = scmp.ne.s32.totalorder %s198, %s199
      %p211 = scmp.eq.s32.totalorder %s27, 1
      %p212 = por %p210, %p211
      %p214 = scmp.ne.s32.totalorder %s199, %s213
      %p215 = scmp.eq.s32.totalorder %s27, 0
      %p216 = por %p214, %p215
      %s218 = sadd.s32 %s217, 1
      %p221 = scmp.eq.s32.totalorder %s21, 1
      %p222 = scmp.ne.s32.totalorder %s217, %s219
      %p223 = scmp.eq.s32.totalorder %s21, 0
      %p224 = por %p222, %p223
      %p225 = scmp.ne.s32.totalorder %s217, %s219
      %p226 = scmp.eq.s32.totalorder %s26, 1
      %p227 = por %p225, %p226
      %p228 = scmp.ne.s32.totalorder %s219, %s220
      %p229 = scmp.eq.s32.totalorder %s26, 0
      %p230 = por %p228, %p229
      %p231 = scmp.ne.s32.totalorder %s219, %s220
      %p232 = scmp.eq.s32.totalorder %s27, 1
      %p233 = por %p231, %p232
      %p235 = scmp.ne.s32.totalorder %s220, %s234
      %p236 = scmp.eq.s32.totalorder %s27, 0
      %p237 = por %p235, %p236
      %s239 = sadd.s32 %s238, 1
      %p242 = scmp.eq.s32.totalorder %s21, 1
      %p243 = scmp.ne.s32.totalorder %s238, %s240
      %p244 = scmp.eq.s32.totalorder %s21, 0
      %p245 = por %p243, %p244
      %p246 = scmp.ne.s32.totalorder %s238, %s240
      %p247 = scmp.eq.s32.totalorder %s26, 1
      %p248 = por %p246, %p247
      %p249 = scmp.ne.s32.totalorder %s240, %s241
      %p250 = scmp.eq.s32.totalorder %s26, 0
      %p251 = por %p249, %p250
      %p252 = scmp.ne.s32.totalorder %s240, %s241
      %p253 = scmp.eq.s32.totalorder %s27, 1
      %p254 = por %p252, %p253
      %p256 = scmp.ne.s32.totalorder %s241, %s255
      %p257 = scmp.eq.s32.totalorder %s27, 0
      %p258 = por %p256, %p257
      %s260 = sadd.s32 %s259, 1
      %p263 = scmp.eq.s32.totalorder %s21, 1
      %p264 = scmp.ne.s32.totalorder %s259, %s261
      %p265 = scmp.eq.s32.totalorder %s21, 0
      %p266 = por %p264, %p265
      %p267 = scmp.ne.s32.totalorder %s259, %s261
      %p268 = scmp.eq.s32.totalorder %s26, 1
      %p269 = por %p267, %p268
      %p270 = scmp.ne.s32.totalorder %s261, %s262
      %p271 = scmp.eq.s32.totalorder %s26, 0
      %p272 = por %p270, %p271
      %p273 = scmp.ne.s32.totalorder %s261, %s262
      %p274 = scmp.eq.s32.totalorder %s27, 1
      %p275 = por %p273, %p274
      %p277 = scmp.ne.s32.totalorder %s262, %s276
      %p278 = scmp.eq.s32.totalorder %s27, 0
      %p279 = por %p277, %p278
      %s281 = sadd.s32 %s280, 1
      %p284 = scmp.eq.s32.totalorder %s21, 1
      %p285 = scmp.ne.s32.totalorder %s280, %s282
      %p286 = scmp.eq.s32.totalorder %s21, 0
      %p287 = por %p285, %p286
      %p288 = scmp.ne.s32.totalorder %s280, %s282
      %p289 = scmp.eq.s32.totalorder %s26, 1
      %p290 = por %p288, %p289
      %p291 = scmp.ne.s32.totalorder %s282, %s283
      %p292 = scmp.eq.s32.totalorder %s26, 0
      %p293 = por %p291, %p292
      %p294 = scmp.ne.s32.totalorder %s282, %s283
      %p295 = scmp.eq.s32.totalorder %s27, 1
      %p296 = por %p294, %p295
      %p298 = scmp.ne.s32.totalorder %s283, %s297
      %p299 = scmp.eq.s32.totalorder %s27, 0
      %p300 = por %p298, %p299
      %s301 = ssub.s32 %s21, %s28
      %p302 = scmp.eq.s32.totalorder %s301, 0
      %s304 = sadd.s32 %s303, 1
      %s305 = scalar_select %p302, %s303, %s304
      %p308 = pneg %p302
      %p309 = scmp.eq.s32.totalorder %s21, 1
      %p310 = por %p308, %p309
      %p311 = scmp.ne.s32.totalorder %s303, %s306
      %p312 = scmp.eq.s32.totalorder %s21, 0
      %p313 = por %p311, %p312
      %p314 = scmp.ne.s32.totalorder %s303, %s306
      %p315 = scmp.eq.s32.totalorder %s26, 1
      %p316 = por %p314, %p315
      %p317 = scmp.ne.s32.totalorder %s306, %s307
      %p318 = scmp.eq.s32.totalorder %s26, 0
      %p319 = por %p317, %p318
      %p320 = scmp.ne.s32.totalorder %s306, %s307
      %p321 = scmp.eq.s32.totalorder %s27, 1
      %p322 = por %p320, %p321
      %p324 = scmp.ne.s32.totalorder %s307, %s323
      %p325 = scmp.eq.s32.totalorder %s27, 0
      %p326 = por %p324, %p325
      %p327 = scmp.le.s32.totalorder 1, %s21
      %p328 = scmp.lt.s32.totalorder %s21, 3
      %p329 = pnand %p327, %p328
      %p330 = pneg %p329
      // Predicated region
      $region9: #{tpu_custom_call.1} parent=5 // pred_check
        _
      $region10: #{tpu_custom_call.1} parent=5 // pred_check_branch
        %332 = sbr.rel (%p329) target = $region12
      $region11: #{tpu_custom_call.1} parent=5 // pred_region
        %s333 = ssub.s32 %s21, 1
        // Predicated region
        $region13: #{tpu_custom_call.1} parent=11 // pred_check
          %p334 = pneg %p94
        $region14: #{tpu_custom_call.1} parent=11 // pred_check_branch
          %336 = sbr.rel (%p334) target = $region16
        $region15: #{tpu_custom_call.1} parent=11 // pred_region
          _
        $region16: #{tpu_custom_call.1} parent=11 // pred_fallthru
          _
        // Predicated region
        $region17: #{tpu_custom_call.1} parent=11 // pred_check
          %p337 = pneg %p167
        $region18: #{tpu_custom_call.1} parent=11 // pred_check_branch
          %339 = sbr.rel (%p337) target = $region20
        $region19: #{tpu_custom_call.1} parent=11 // pred_region
          _
        $region20: #{tpu_custom_call.1} parent=11 // pred_fallthru
          _
        // Predicated region
        $region21: #{tpu_custom_call.1} parent=11 // pred_check
          %p340 = pneg %p188
        $region22: #{tpu_custom_call.1} parent=11 // pred_check_branch
          %342 = sbr.rel (%p340) target = $region24
        $region23: #{tpu_custom_call.1} parent=11 // pred_region
          _
        $region24: #{tpu_custom_call.1} parent=11 // pred_fallthru
          _
        // Predicated region
        $region25: #{tpu_custom_call.1} parent=11 // pred_check
          %p343 = pneg %p209
        $region26: #{tpu_custom_call.1} parent=11 // pred_check_branch
          %345 = sbr.rel (%p343) target = $region28
        $region27: #{tpu_custom_call.1} parent=11 // pred_region
          _
        $region28: #{tpu_custom_call.1} parent=11 // pred_fallthru
          _
        // Predicated region
        $region29: #{tpu_custom_call.1} parent=11 // pred_check
          %p346 = pneg %p230
        $region30: #{tpu_custom_call.1} parent=11 // pred_check_branch
          %348 = sbr.rel (%p346) target = $region32
        $region31: #{tpu_custom_call.1} parent=11 // pred_region
          _
        $region32: #{tpu_custom_call.1} parent=11 // pred_fallthru
          _
        // Predicated region
        $region33: #{tpu_custom_call.1} parent=11 // pred_check
          %p349 = pneg %p251
        $region34: #{tpu_custom_call.1} parent=11 // pred_check_branch
          %351 = sbr.rel (%p349) target = $region36
        $region35: #{tpu_custom_call.1} parent=11 // pred_region
          _
        $region36: #{tpu_custom_call.1} parent=11 // pred_fallthru
          _
        // Predicated region
        $region37: #{tpu_custom_call.1} parent=11 // pred_check
          %p352 = pneg %p272
        $region38: #{tpu_custom_call.1} parent=11 // pred_check_branch
          %354 = sbr.rel (%p352) target = $region40
        $region39: #{tpu_custom_call.1} parent=11 // pred_region
          _
        $region40: #{tpu_custom_call.1} parent=11 // pred_fallthru
          _
        // Predicated region
        $region41: #{tpu_custom_call.1} parent=11 // pred_check
          %p355 = pneg %p293
        $region42: #{tpu_custom_call.1} parent=11 // pred_check_branch
          %357 = sbr.rel (%p355) target = $region44
        $region43: #{tpu_custom_call.1} parent=11 // pred_region
          _
        $region44: #{tpu_custom_call.1} parent=11 // pred_fallthru
          _
      $region12: #{tpu_custom_call.1} parent=5 // pred_fallthru
        _
      %p358 = scmp.lt.s32.totalorder %s21, 2
      // Predicated region
      $region45: #{tpu_custom_call.1} parent=5 // pred_check
        %p359 = pneg %p358
      $region46: #{tpu_custom_call.1} parent=5 // pred_check_branch
        %361 = sbr.rel (%p359) target = $region48
      $region47: #{tpu_custom_call.1} parent=5 // pred_region
        // Predicated region
        $region49: #{tpu_custom_call.1} parent=47 // pred_check
          %p362 = pneg %p41
        $region50: #{tpu_custom_call.1} parent=47 // pred_check_branch
          %364 = sbr.rel (%p362) target = $region52
        $region51: #{tpu_custom_call.1} parent=47 // pred_region
          %p365 = scmp.lt.s32.totalorder %s21, 1
          %s366 = scalar_select %p365, %s21, 1
          %s367 = smul.addr %s366, 8
          %s368 = smul.addr %s367, 8
          %s369 = scalar_lea.vmem %s0, %s368
        $region52: #{tpu_custom_call.1} parent=47 // pred_fallthru
          _
        // Predicated region
        $region53: #{tpu_custom_call.1} parent=47 // pred_check
          %p370 = pneg %p67
        $region54: #{tpu_custom_call.1} parent=47 // pred_check_branch
          %372 = sbr.rel (%p370) target = $region56
        $region55: #{tpu_custom_call.1} parent=47 // pred_region
          %p373 = scmp.lt.s32.totalorder %s21, 1
          %s374 = scalar_select %p373, %s21, 1
          %s375 = smul.addr %s374, 8
          %s376 = smul.addr %s375, 8
          %s377 = scalar_lea.vmem %s1, %s376
        $region56: #{tpu_custom_call.1} parent=47 // pred_fallthru
          _
        // Predicated region
        $region57: #{tpu_custom_call.1} parent=47 // pred_check
          %p378 = pneg %p114
        $region58: #{tpu_custom_call.1} parent=47 // pred_check_branch
          %380 = sbr.rel (%p378) target = $region60
        $region59: #{tpu_custom_call.1} parent=47 // pred_region
          %p381 = scmp.lt.s32.totalorder %s21, 1
          %s382 = scalar_select %p381, %s21, 1
          %s383 = smul.addr %s382, 2
          %s384 = smul.addr %s383, 4
          %s385 = scalar_lea.vmem %s3, %s384
        $region60: #{tpu_custom_call.1} parent=47 // pred_fallthru
          _
        // Predicated region
        $region61: #{tpu_custom_call.1} parent=47 // pred_check
          %p386 = pneg %p140
        $region62: #{tpu_custom_call.1} parent=47 // pred_check_branch
          %388 = sbr.rel (%p386) target = $region64
        $region63: #{tpu_custom_call.1} parent=47 // pred_region
          %p389 = scmp.lt.s32.totalorder %s21, 1
          %s390 = scalar_select %p389, %s21, 1
          %s391 = smul.addr %s390, 2
          %s392 = smul.addr %s391, 8
          %s393 = scalar_lea.vmem %s4, %s392
        $region64: #{tpu_custom_call.1} parent=47 // pred_fallthru
          _
      $region48: #{tpu_custom_call.1} parent=5 // pred_fallthru
        _
      %p394 = scmp.le.s32.totalorder 1, %s21
      %p395 = scmp.lt.s32.totalorder %s21, 3
      %p396 = pnand %p394, %p395
      %p397 = pneg %p396
      // Predicated region
      $region65: #{tpu_custom_call.1} parent=5 // pred_check
        _
      $region66: #{tpu_custom_call.1} parent=5 // pred_check_branch
        %399 = sbr.rel (%p396) target = $region68
      $region67: #{tpu_custom_call.1} parent=5 // pred_region
        %s400 = ssub.s32 %s21, 1
        %p401 = scmp.lt.s32.totalorder %s26, 1
        %s402 = scalar_select %p401, %s26, 1
        %s403 = smul.addr %s402, 8
        %s404 = smul.addr %s403, 8
        %s405 = scalar_lea.vmem %s0, %s404
        %p406 = pneg %p47
        %p407 = pneg %p44
        %p408 = scmp.lt.s32.totalorder %s26, 1
        %s409 = scalar_select %p408, %s26, 1
        %s410 = smul.addr %s409, 8
        %s411 = smul.addr %s410, 8
        %s412 = scalar_lea.vmem %s1, %s411
        %p413 = pneg %p73
        %p414 = pneg %p70
        %p415 = pneg %p94
        %p416 = pneg %p91
        %p417 = scmp.lt.s32.totalorder %s26, 1
        %s418 = scalar_select %p417, %s26, 1
        %s419 = smul.addr %s418, 2
        %s420 = smul.addr %s419, 4
        %s421 = scalar_lea.vmem %s3, %s420
        %p422 = pneg %p120
        %p423 = pneg %p117
        %p424 = scmp.lt.s32.totalorder %s26, 1
        %s425 = scalar_select %p424, %s26, 1
        %s426 = smul.addr %s425, 2
        %s427 = smul.addr %s426, 8
        %s428 = scalar_lea.vmem %s4, %s427
        %p429 = pneg %p146
        %p430 = pneg %p143
        %p431 = pneg %p167
        %p432 = pneg %p164
        %p433 = pneg %p188
        %p434 = pneg %p185
        %p435 = pneg %p209
        %p436 = pneg %p206
        %p437 = pneg %p230
        %p438 = pneg %p227
        %p439 = pneg %p251
        %p440 = pneg %p248
        %p441 = pneg %p272
        %p442 = pneg %p269
        %p443 = pneg %p293
        %p444 = pneg %p290
        %p445 = pneg %p319
        %p446 = pneg %p316
        %s447 = sand.u32 %s306, 1
        %s448 = scalar_lea.sflag [#allocation3], %s447
        %s449 = sand.u32 %s306, 1
        %s450 = smul.addr %s449, 64
        %s451 = scalar_lea.vmem [#allocation2], %s450
        %p452 = scmp.lt.s32.totalorder %s26, 1
        %s453 = scalar_select %p452, %s26, 1
        %s454 = smul.addr %s453, 8
        %s455 = smul.addr %s454, 8
        %s456 = scalar_lea.vmem %s0, %s455
        %p457 = scmp.lt.s32.totalorder %s26, 1
        %s458 = scalar_select %p457, %s26, 1
        %s459 = smul.addr %s458, 8
        %s460 = smul.addr %s459, 8
        %s461 = scalar_lea.vmem %s1, %s460
        %p462 = scmp.lt.s32.totalorder %s26, 1
        %s463 = scalar_select %p462, %s26, 1
        %s464 = smul.addr %s463, 2
        %s465 = smul.addr %s464, 4
        %s466 = scalar_lea.vmem %s3, %s465
        %p467 = scmp.lt.s32.totalorder %s26, 1
        %s468 = scalar_select %p467, %s26, 1
        %s469 = smul.addr %s468, 2
        %s470 = smul.addr %s469, 8
        %s471 = scalar_lea.vmem %s4, %s470
        %v473 = vld [vmem:[%s456] sm:$0xff]
        %v474 = vld [vmem:[%s456 + $0x8] sm:$0xff]
        %v475 = vld [vmem:[%s456 + $0x10] sm:$0xff]
        %v476 = vld [vmem:[%s456 + $0x18] sm:$0xff]
        %v477 = vld [vmem:[%s456 + $0x20] sm:$0xff]
        %v478 = vld [vmem:[%s456 + $0x28] sm:$0xff]
        %v479 = vld [vmem:[%s456 + $0x30] sm:$0xff]
        %v480 = vld [vmem:[%s456 + $0x38] sm:$0xff]
        %v481 = vlaneseq
        %v482 = vand.u32 %v481, 127
        %483 = vset.pattern.permute.xlu0 0
        %484 = vperm.xlu0 %483, %v473
        %v485 = vpop.permute.xlu0 %484
        %486 = vset.pattern.permute.xlu0 0
        %487 = vperm.xlu0 %486, %v474
        %v488 = vpop.permute.xlu0 %487
        %489 = vset.pattern.permute.xlu0 0
        %490 = vperm.xlu0 %489, %v475
        %v491 = vpop.permute.xlu0 %490
        %492 = vset.pattern.permute.xlu0 0
        %493 = vperm.xlu0 %492, %v476
        %v494 = vpop.permute.xlu0 %493
        %495 = vset.pattern.permute.xlu0 0
        %496 = vperm.xlu0 %495, %v477
        %v497 = vpop.permute.xlu0 %496
        %498 = vset.pattern.permute.xlu0 0
        %499 = vperm.xlu0 %498, %v478
        %v500 = vpop.permute.xlu0 %499
        %501 = vset.pattern.permute.xlu0 0
        %502 = vperm.xlu0 %501, %v479
        %v503 = vpop.permute.xlu0 %502
        %504 = vset.pattern.permute.xlu0 0
        %505 = vperm.xlu0 %504, %v480
        %v506 = vpop.permute.xlu0 %505
        %vm507 = vcmp.eq.s32.totalorder %v482, %v485
        %vm508 = vcmp.eq.s32.totalorder %v482, %v488
        %vm509 = vcmp.eq.s32.totalorder %v482, %v491
        %vm510 = vcmp.eq.s32.totalorder %v482, %v494
        %vm511 = vcmp.eq.s32.totalorder %v482, %v497
        %vm512 = vcmp.eq.s32.totalorder %v482, %v500
        %vm513 = vcmp.eq.s32.totalorder %v482, %v503
        %vm514 = vcmp.eq.s32.totalorder %v482, %v506
        %v515 = vsel %vm507, 1, 0
        %v516 = vsel %vm508, 1, 0
        %v517 = vsel %vm509, 1, 0
        %v518 = vsel %vm510, 1, 0
        %v519 = vsel %vm511, 1, 0
        %v520 = vsel %vm512, 1, 0
        %v521 = vsel %vm513, 1, 0
        %v522 = vsel %vm514, 1, 0
        %v523 = vcvt.s32.f32 %v515
        %v524 = vcvt.s32.f32 %v516
        %v525 = vcvt.s32.f32 %v517
        %v526 = vcvt.s32.f32 %v518
        %v527 = vcvt.s32.f32 %v519
        %v528 = vcvt.s32.f32 %v520
        %v529 = vcvt.s32.f32 %v521
        %v530 = vcvt.s32.f32 %v522
        %v531 = vld [vmem:[%s5] sm:$0xff]
        %v532 = vld [vmem:[%s5 + $0x8] sm:$0xff]
        %v533 = vld [vmem:[%s5 + $0x10] sm:$0xff]
        %v534 = vld [vmem:[%s5 + $0x18] sm:$0xff]
        %v535 = vld [vmem:[%s5 + $0x20] sm:$0xff]
        %v536 = vld [vmem:[%s5 + $0x28] sm:$0xff]
        %v537 = vld [vmem:[%s5 + $0x30] sm:$0x3]
        %v538 = vld [vmem:[%s2] sm:$0xff]
        %v539 = vld [vmem:[%s2 + $0x8] sm:$0xff]
        %v540 = vld [vmem:[%s2 + $0x10] sm:$0xff]
        %v541 = vld [vmem:[%s2 + $0x18] sm:$0xff]
        %v542 = vld [vmem:[%s2 + $0x20] sm:$0xff]
        %v543 = vld [vmem:[%s2 + $0x28] sm:$0xff]
        %v544 = vld [vmem:[%s2 + $0x30] sm:$0xff]
        %v545 = vld [vmem:[%s2 + $0x38] sm:$0xff]
        %546 = vset.pattern.permute.xlu0 0
        %547 = vperm.xlu0 %546, %v538
        %v548 = vpop.permute.xlu0 %547
        %549 = vset.pattern.permute.xlu0 0
        %550 = vperm.xlu0 %549, %v539
        %v551 = vpop.permute.xlu0 %550
        %552 = vset.pattern.permute.xlu0 0
        %553 = vperm.xlu0 %552, %v540
        %v554 = vpop.permute.xlu0 %553
        %555 = vset.pattern.permute.xlu0 0
        %556 = vperm.xlu0 %555, %v541
        %v557 = vpop.permute.xlu0 %556
        %558 = vset.pattern.permute.xlu0 0
        %559 = vperm.xlu0 %558, %v542
        %v560 = vpop.permute.xlu0 %559
        %561 = vset.pattern.permute.xlu0 0
        %562 = vperm.xlu0 %561, %v543
        %v563 = vpop.permute.xlu0 %562
        %564 = vset.pattern.permute.xlu0 0
        %565 = vperm.xlu0 %564, %v544
        %v566 = vpop.permute.xlu0 %565
        %567 = vset.pattern.permute.xlu0 0
        %568 = vperm.xlu0 %567, %v545
        %v569 = vpop.permute.xlu0 %568
        %vm570 = vcmp.eq.s32.totalorder %v482, %v548
        %vm571 = vcmp.eq.s32.totalorder %v482, %v551
        %vm572 = vcmp.eq.s32.totalorder %v482, %v554
        %vm573 = vcmp.eq.s32.totalorder %v482, %v557
        %vm574 = vcmp.eq.s32.totalorder %v482, %v560
        %vm575 = vcmp.eq.s32.totalorder %v482, %v563
        %vm576 = vcmp.eq.s32.totalorder %v482, %v566
        %vm577 = vcmp.eq.s32.totalorder %v482, %v569
        %v578 = vsel %vm570, 1, 0
        %v579 = vsel %vm571, 1, 0
        %v580 = vsel %vm572, 1, 0
        %v581 = vsel %vm573, 1, 0
        %v582 = vsel %vm574, 1, 0
        %v583 = vsel %vm575, 1, 0
        %v584 = vsel %vm576, 1, 0
        %v585 = vsel %vm577, 1, 0
        %v586 = vcvt.s32.f32 %v578
        %v587 = vcvt.s32.f32 %v579
        %v588 = vcvt.s32.f32 %v580
        %v589 = vcvt.s32.f32 %v581
        %v590 = vcvt.s32.f32 %v582
        %v591 = vcvt.s32.f32 %v583
        %v592 = vcvt.s32.f32 %v584
        %v593 = vcvt.s32.f32 %v585
        %v594 = vld [vmem:[%s6] sm:$0xff]
        %v595 = vld [vmem:[%s6 + $0x8] sm:$0xff]
        %v596 = vld [vmem:[%s6 + $0x10] sm:$0xff]
        %v597 = vld [vmem:[%s6 + $0x18] sm:$0xff]
        %v598 = vld [vmem:[%s6 + $0x20] sm:$0xff]
        %v599 = vld [vmem:[%s6 + $0x28] sm:$0xff]
        %v600 = vld [vmem:[%s6 + $0x30] sm:$0x3f]
        %vm601 = vcmask 441344
        %v603 = vsel %vm601, %v586, 0
        %v606 = vsel %vm601, %v587, 0
        %v609 = vsel %vm601, %v588, 0
        %v612 = vsel %vm601, %v589, 0
        %v615 = vsel %vm601, %v590, 0
        %v618 = vsel %vm601, %v591, 0
        %v621 = vsel %vm601, %v592, 0
        %v624 = vsel %vm601, %v593, 0
        %vm626 = vcmask 1045504
        %v628 = vsel %vm626, %v600, 0
        %630 = vmatprep.subr.mxu0 0.0
        %631 = vmatpush1.msra.mxu0 0.0
        %632 = vmatprep.subr.mxu0 0.0
        %633 = vmatpush1.msra.mxu0 0.0
        %634 = vmatprep.subr.mxu0 0.0
        %635 = vmatpush1.msra.mxu0 0.0
        %636 = vmatprep.subr.mxu0 0.0
        %637 = vmatpush1.msra.mxu0 0.0
        %638 = vmatprep.subr.mxu0 0.0
        %639 = vmatpush1.msra.mxu0 0.0
        %640 = vmatprep.subr.mxu0 0.0
        %641 = vmatpush1.msra.mxu0 0.0
        %642 = vmatprep.subr.mxu0 0.0
        %643 = vmatpush1.msra.mxu0 0.0
        %644 = vmatprep.subr.mxu0 0.0
        %645 = vmatpush1.msra.mxu0 0.0
        %646 = vmatprep.subr.mxu0 0.0
        %647 = vmatpush1.msra.mxu0 0.0
        %648 = vmatprep.subr.mxu0 0.0
        %649 = vmatpush1.msra.mxu0 %v628
        %650 = vmatprep.subr.mxu0 0.0
        %651 = vmatpush1.msra.mxu0 %v599
        %652 = vmatprep.subr.mxu0 0.0
        %653 = vmatpush1.msra.mxu0 %v598
        %654 = vmatprep.subr.mxu0 0.0
        %655 = vmatpush1.msra.mxu0 %v597
        %656 = vmatprep.subr.mxu0 0.0
        %657 = vmatpush1.msra.mxu0 %v596
        %658 = vmatprep.subr.mxu0 0.0
        %659 = vmatpush1.msra.mxu0 %v595
        %660 = vmatprep.subr.mxu0 0.0
        %661 = vmatpush1.msra.mxu0 %v594
        %662 = vmatprep.subr.mxu0 0.0
        %663 = vmatpush2.msra.mxu0 0.0
        %664 = vmatprep.subr.mxu0 0.0
        %665 = vmatpush2.msra.mxu0 0.0
        %666 = vmatprep.subr.mxu0 0.0
        %667 = vmatpush2.msra.mxu0 0.0
        %668 = vmatprep.subr.mxu0 0.0
        %669 = vmatpush2.msra.mxu0 0.0
        %670 = vmatprep.subr.mxu0 0.0
        %671 = vmatpush2.msra.mxu0 0.0
        %672 = vmatprep.subr.mxu0 0.0
        %673 = vmatpush2.msra.mxu0 0.0
        %674 = vmatprep.subr.mxu0 0.0
        %675 = vmatpush2.msra.mxu0 0.0
        %676 = vmatprep.subr.mxu0 0.0
        %677 = vmatpush2.msra.mxu0 0.0
        %678 = vmatprep.subr.mxu0 0.0
        %679 = vmatpush2.msra.mxu0 0.0
        %680 = vmatprep.subr.mxu0 0.0
        %681 = vmatpush2.msra.mxu0 0.0
        %682 = vmatprep.subr.mxu0 0.0
        %683 = vmatpush2.msra.mxu0 0.0
        %684 = vmatprep.subr.mxu0 0.0
        %685 = vmatpush2.msra.mxu0 0.0
        %686 = vmatprep.subr.mxu0 0.0
        %687 = vmatpush2.msra.mxu0 0.0
        %688 = vmatprep.subr.mxu0 0.0
        %689 = vmatpush2.msra.mxu0 0.0
        %690 = vmatprep.subr.mxu0 0.0
        %691 = vmatpush2.msra.mxu0 0.0
        %692 = vmatprep.subr.mxu0 0.0
        %693 = vmatpush2.msra.mxu0 0.0
        %694 = vmatprep.mubr.f32.mxu0 0.0
        %695 = vmatmul.mubr.f32.gmra.mxu0 %v603
        %v696 = vpop.f32.mrf.mxu0
        %v697 = vadd.f32 0.0, %v696
        %v698 = vpop.f32.mrf.mxu0
        %699 = vmatprep.mubr.f32.mxu0 0.0
        %700 = vmatmul.mubr.f32.gmra.mxu0 %v606
        %v701 = vpop.f32.mrf.mxu0
        %v702 = vadd.f32 0.0, %v701
        %v703 = vpop.f32.mrf.mxu0
        %704 = vmatprep.mubr.f32.mxu0 0.0
        %705 = vmatmul.mubr.f32.gmra.mxu0 %v609
        %v706 = vpop.f32.mrf.mxu0
        %v707 = vadd.f32 0.0, %v706
        %v708 = vpop.f32.mrf.mxu0
        %709 = vmatprep.mubr.f32.mxu0 0.0
        %710 = vmatmul.mubr.f32.gmra.mxu0 %v612
        %v711 = vpop.f32.mrf.mxu0
        %v712 = vadd.f32 0.0, %v711
        %v713 = vpop.f32.mrf.mxu0
        %714 = vmatprep.mubr.f32.mxu0 0.0
        %715 = vmatmul.mubr.f32.gmra.mxu0 %v615
        %v716 = vpop.f32.mrf.mxu0
        %v717 = vadd.f32 0.0, %v716
        %v718 = vpop.f32.mrf.mxu0
        %719 = vmatprep.mubr.f32.mxu0 0.0
        %720 = vmatmul.mubr.f32.gmra.mxu0 %v618
        %v721 = vpop.f32.mrf.mxu0
        %v722 = vadd.f32 0.0, %v721
        %v723 = vpop.f32.mrf.mxu0
        %724 = vmatprep.mubr.f32.mxu0 0.0
        %725 = vmatmul.mubr.f32.gmra.mxu0 %v621
        %v726 = vpop.f32.mrf.mxu0
        %v727 = vadd.f32 0.0, %v726
        %v728 = vpop.f32.mrf.mxu0
        %729 = vmatprep.mubr.f32.mxu0 0.0
        %730 = vmatmul.mubr.f32.gmra.mxu0 %v624
        %v731 = vpop.f32.mrf.mxu0
        %v732 = vadd.f32 0.0, %v731
        %v733 = vpop.f32.mrf.mxu0
        %734 = vdwg.mxu0
        %v735 = vld [vmem:[%s461] sm:$0xff]
        %v736 = vld [vmem:[%s461 + $0x8] sm:$0xff]
        %v737 = vld [vmem:[%s461 + $0x10] sm:$0xff]
        %v738 = vld [vmem:[%s461 + $0x18] sm:$0xff]
        %v739 = vld [vmem:[%s461 + $0x20] sm:$0xff]
        %v740 = vld [vmem:[%s461 + $0x28] sm:$0xff]
        %v741 = vld [vmem:[%s461 + $0x30] sm:$0xff]
        %v742 = vld [vmem:[%s461 + $0x38] sm:$0xff]
        %743 = vset.pattern.permute.xlu0 0
        %744 = vperm.xlu0 %743, %v735
        %v745 = vpop.permute.xlu0 %744
        %746 = vset.pattern.permute.xlu0 0
        %747 = vperm.xlu0 %746, %v736
        %v748 = vpop.permute.xlu0 %747
        %749 = vset.pattern.permute.xlu0 0
        %750 = vperm.xlu0 %749, %v737
        %v751 = vpop.permute.xlu0 %750
        %752 = vset.pattern.permute.xlu0 0
        %753 = vperm.xlu0 %752, %v738
        %v754 = vpop.permute.xlu0 %753
        %755 = vset.pattern.permute.xlu0 0
        %756 = vperm.xlu0 %755, %v739
        %v757 = vpop.permute.xlu0 %756
        %758 = vset.pattern.permute.xlu0 0
        %759 = vperm.xlu0 %758, %v740
        %v760 = vpop.permute.xlu0 %759
        %761 = vset.pattern.permute.xlu0 0
        %762 = vperm.xlu0 %761, %v741
        %v763 = vpop.permute.xlu0 %762
        %764 = vset.pattern.permute.xlu0 0
        %765 = vperm.xlu0 %764, %v742
        %v766 = vpop.permute.xlu0 %765
        %vm767 = vcmp.eq.s32.totalorder %v482, %v745
        %vm768 = vcmp.eq.s32.totalorder %v482, %v748
        %vm769 = vcmp.eq.s32.totalorder %v482, %v751
        %vm770 = vcmp.eq.s32.totalorder %v482, %v754
        %vm771 = vcmp.eq.s32.totalorder %v482, %v757
        %vm772 = vcmp.eq.s32.totalorder %v482, %v760
        %vm773 = vcmp.eq.s32.totalorder %v482, %v763
        %vm774 = vcmp.eq.s32.totalorder %v482, %v766
        %v775 = vsel %vm767, 1, 0
        %v776 = vsel %vm768, 1, 0
        %v777 = vsel %vm769, 1, 0
        %v778 = vsel %vm770, 1, 0
        %v779 = vsel %vm771, 1, 0
        %v780 = vsel %vm772, 1, 0
        %v781 = vsel %vm773, 1, 0
        %v782 = vsel %vm774, 1, 0
        %v783 = vcvt.s32.f32 %v775
        %v784 = vcvt.s32.f32 %v776
        %v785 = vcvt.s32.f32 %v777
        %v786 = vcvt.s32.f32 %v778
        %v787 = vcvt.s32.f32 %v779
        %v788 = vcvt.s32.f32 %v780
        %v789 = vcvt.s32.f32 %v781
        %v790 = vcvt.s32.f32 %v782
        %v791 = vld [vmem:[%s7] sm:$0xf]
        %vm792 = vcmask 31744
        %v794 = vsel %vm792, %v783, 0
        %v797 = vsel %vm792, %v784, 0
        %v800 = vsel %vm792, %v785, 0
        %v803 = vsel %vm792, %v786, 0
        %v806 = vsel %vm792, %v787, 0
        %v809 = vsel %vm792, %v788, 0
        %v812 = vsel %vm792, %v789, 0
        %v815 = vsel %vm792, %v790, 0
        %vm817 = vcmask 1043456
        %v819 = vsel %vm817, %v791, 0
        %821 = vmatprep.subr.mxu0 0.0
        %822 = vmatpush1.msra.mxu0 0.0
        %823 = vmatprep.subr.mxu0 0.0
        %824 = vmatpush1.msra.mxu0 0.0
        %825 = vmatprep.subr.mxu0 0.0
        %826 = vmatpush1.msra.mxu0 0.0
        %827 = vmatprep.subr.mxu0 0.0
        %828 = vmatpush1.msra.mxu0 0.0
        %829 = vmatprep.subr.mxu0 0.0
        %830 = vmatpush1.msra.mxu0 0.0
        %831 = vmatprep.subr.mxu0 0.0
        %832 = vmatpush1.msra.mxu0 0.0
        %833 = vmatprep.subr.mxu0 0.0
        %834 = vmatpush1.msra.mxu0 0.0
        %835 = vmatprep.subr.mxu0 0.0
        %836 = vmatpush1.msra.mxu0 0.0
        %837 = vmatprep.subr.mxu0 0.0
        %838 = vmatpush1.msra.mxu0 0.0
        %839 = vmatprep.subr.mxu0 0.0
        %840 = vmatpush1.msra.mxu0 0.0
        %841 = vmatprep.subr.mxu0 0.0
        %842 = vmatpush1.msra.mxu0 0.0
        %843 = vmatprep.subr.mxu0 0.0
        %844 = vmatpush1.msra.mxu0 0.0
        %845 = vmatprep.subr.mxu0 0.0
        %846 = vmatpush1.msra.mxu0 0.0
        %847 = vmatprep.subr.mxu0 0.0
        %848 = vmatpush1.msra.mxu0 0.0
        %849 = vmatprep.subr.mxu0 0.0
        %850 = vmatpush1.msra.mxu0 0.0
        %851 = vmatprep.subr.mxu0 0.0
        %852 = vmatpush1.msra.mxu0 %v819
        %853 = vmatprep.subr.mxu0 0.0
        %854 = vmatpush2.msra.mxu0 0.0
        %855 = vmatprep.subr.mxu0 0.0
        %856 = vmatpush2.msra.mxu0 0.0
        %857 = vmatprep.subr.mxu0 0.0
        %858 = vmatpush2.msra.mxu0 0.0
        %859 = vmatprep.subr.mxu0 0.0
        %860 = vmatpush2.msra.mxu0 0.0
        %861 = vmatprep.subr.mxu0 0.0
        %862 = vmatpush2.msra.mxu0 0.0
        %863 = vmatprep.subr.mxu0 0.0
        %864 = vmatpush2.msra.mxu0 0.0
        %865 = vmatprep.subr.mxu0 0.0
        %866 = vmatpush2.msra.mxu0 0.0
        %867 = vmatprep.subr.mxu0 0.0
        %868 = vmatpush2.msra.mxu0 0.0
        %869 = vmatprep.subr.mxu0 0.0
        %870 = vmatpush2.msra.mxu0 0.0
        %871 = vmatprep.subr.mxu0 0.0
        %872 = vmatpush2.msra.mxu0 0.0
        %873 = vmatprep.subr.mxu0 0.0
        %874 = vmatpush2.msra.mxu0 0.0
        %875 = vmatprep.subr.mxu0 0.0
        %876 = vmatpush2.msra.mxu0 0.0
        %877 = vmatprep.subr.mxu0 0.0
        %878 = vmatpush2.msra.mxu0 0.0
        %879 = vmatprep.subr.mxu0 0.0
        %880 = vmatpush2.msra.mxu0 0.0
        %881 = vmatprep.subr.mxu0 0.0
        %882 = vmatpush2.msra.mxu0 0.0
        %883 = vmatprep.subr.mxu0 0.0
        %884 = vmatpush2.msra.mxu0 0.0
        %885 = vmatprep.mubr.f32.mxu0 0.0
        %886 = vmatmul.mubr.f32.gmra.mxu0 %v794
        %v887 = vpop.f32.mrf.mxu0
        %v888 = vadd.f32 0.0, %v887
        %v889 = vpop.f32.mrf.mxu0
        %890 = vmatprep.mubr.f32.mxu0 0.0
        %891 = vmatmul.mubr.f32.gmra.mxu0 %v797
        %v892 = vpop.f32.mrf.mxu0
        %v893 = vadd.f32 0.0, %v892
        %v894 = vpop.f32.mrf.mxu0
        %895 = vmatprep.mubr.f32.mxu0 0.0
        %896 = vmatmul.mubr.f32.gmra.mxu0 %v800
        %v897 = vpop.f32.mrf.mxu0
        %v898 = vadd.f32 0.0, %v897
        %v899 = vpop.f32.mrf.mxu0
        %900 = vmatprep.mubr.f32.mxu0 0.0
        %901 = vmatmul.mubr.f32.gmra.mxu0 %v803
        %v902 = vpop.f32.mrf.mxu0
        %v903 = vadd.f32 0.0, %v902
        %v904 = vpop.f32.mrf.mxu0
        %905 = vmatprep.mubr.f32.mxu0 0.0
        %906 = vmatmul.mubr.f32.gmra.mxu0 %v806
        %v907 = vpop.f32.mrf.mxu0
        %v908 = vadd.f32 0.0, %v907
        %v909 = vpop.f32.mrf.mxu0
        %910 = vmatprep.mubr.f32.mxu0 0.0
        %911 = vmatmul.mubr.f32.gmra.mxu0 %v809
        %v912 = vpop.f32.mrf.mxu0
        %v913 = vadd.f32 0.0, %v912
        %v914 = vpop.f32.mrf.mxu0
        %915 = vmatprep.mubr.f32.mxu0 0.0
        %916 = vmatmul.mubr.f32.gmra.mxu0 %v812
        %v917 = vpop.f32.mrf.mxu0
        %v918 = vadd.f32 0.0, %v917
        %v919 = vpop.f32.mrf.mxu0
        %920 = vmatprep.mubr.f32.mxu0 0.0
        %921 = vmatmul.mubr.f32.gmra.mxu0 %v815
        %v922 = vpop.f32.mrf.mxu0
        %v923 = vadd.f32 0.0, %v922
        %v924 = vpop.f32.mrf.mxu0
        %925 = vdwg.mxu0
        %vm926 = vcmask 408576
        %v928 = vsel %vm926, %v523, 0
        %v931 = vsel %vm926, %v524, 0
        %v934 = vsel %vm926, %v525, 0
        %v937 = vsel %vm926, %v526, 0
        %v940 = vsel %vm926, %v527, 0
        %v943 = vsel %vm926, %v528, 0
        %v946 = vsel %vm926, %v529, 0
        %v949 = vsel %vm926, %v530, 0
        %vm951 = vcmask 1041408
        %v953 = vsel %vm951, %v537, 0
        %955 = vmatprep.subr.mxu0 0.0
        %956 = vmatpush1.msra.mxu0 0.0
        %957 = vmatprep.subr.mxu0 0.0
        %958 = vmatpush1.msra.mxu0 0.0
        %959 = vmatprep.subr.mxu0 0.0
        %960 = vmatpush1.msra.mxu0 0.0
        %961 = vmatprep.subr.mxu0 0.0
        %962 = vmatpush1.msra.mxu0 0.0
        %963 = vmatprep.subr.mxu0 0.0
        %964 = vmatpush1.msra.mxu0 0.0
        %965 = vmatprep.subr.mxu0 0.0
        %966 = vmatpush1.msra.mxu0 0.0
        %967 = vmatprep.subr.mxu0 0.0
        %968 = vmatpush1.msra.mxu0 0.0
        %969 = vmatprep.subr.mxu0 0.0
        %970 = vmatpush1.msra.mxu0 0.0
        %971 = vmatprep.subr.mxu0 0.0
        %972 = vmatpush1.msra.mxu0 0.0
        %973 = vmatprep.subr.mxu0 0.0
        %974 = vmatpush1.msra.mxu0 %v953
        %975 = vmatprep.subr.mxu0 0.0
        %976 = vmatpush1.msra.mxu0 %v536
        %977 = vmatprep.subr.mxu0 0.0
        %978 = vmatpush1.msra.mxu0 %v535
        %979 = vmatprep.subr.mxu0 0.0
        %980 = vmatpush1.msra.mxu0 %v534
        %981 = vmatprep.subr.mxu0 0.0
        %982 = vmatpush1.msra.mxu0 %v533
        %983 = vmatprep.subr.mxu0 0.0
        %984 = vmatpush1.msra.mxu0 %v532
        %985 = vmatprep.subr.mxu0 0.0
        %986 = vmatpush1.msra.mxu0 %v531
        %987 = vmatprep.subr.mxu0 0.0
        %988 = vmatpush2.msra.mxu0 0.0
        %989 = vmatprep.subr.mxu0 0.0
        %990 = vmatpush2.msra.mxu0 0.0
        %991 = vmatprep.subr.mxu0 0.0
        %992 = vmatpush2.msra.mxu0 0.0
        %993 = vmatprep.subr.mxu0 0.0
        %994 = vmatpush2.msra.mxu0 0.0
        %995 = vmatprep.subr.mxu0 0.0
        %996 = vmatpush2.msra.mxu0 0.0
        %997 = vmatprep.subr.mxu0 0.0
        %998 = vmatpush2.msra.mxu0 0.0
        %999 = vmatprep.subr.mxu0 0.0
        %1000 = vmatpush2.msra.mxu0 0.0
        %1001 = vmatprep.subr.mxu0 0.0
        %1002 = vmatpush2.msra.mxu0 0.0
        %1003 = vmatprep.subr.mxu0 0.0
        %1004 = vmatpush2.msra.mxu0 0.0
        %1005 = vmatprep.subr.mxu0 0.0
        %1006 = vmatpush2.msra.mxu0 0.0
        %1007 = vmatprep.subr.mxu0 0.0
        %1008 = vmatpush2.msra.mxu0 0.0
        %1009 = vmatprep.subr.mxu0 0.0
        %1010 = vmatpush2.msra.mxu0 0.0
        %1011 = vmatprep.subr.mxu0 0.0
        %1012 = vmatpush2.msra.mxu0 0.0
        %1013 = vmatprep.subr.mxu0 0.0
        %1014 = vmatpush2.msra.mxu0 0.0
        %1015 = vmatprep.subr.mxu0 0.0
        %1016 = vmatpush2.msra.mxu0 0.0
        %1017 = vmatprep.subr.mxu0 0.0
        %1018 = vmatpush2.msra.mxu0 0.0
        %1019 = vmatprep.mubr.f32.mxu0 0.0
        %1020 = vmatmul.mubr.f32.gmra.mxu0 %v928
        %v1021 = vpop.f32.mrf.mxu0
        %v1022 = vadd.f32 %v697, %v1021
        %v1023 = vpop.f32.mrf.mxu0
        %1024 = vmatprep.mubr.f32.mxu0 0.0
        %1025 = vmatmul.mubr.f32.gmra.mxu0 %v931
        %v1026 = vpop.f32.mrf.mxu0
        %v1027 = vadd.f32 %v702, %v1026
        %v1028 = vpop.f32.mrf.mxu0
        %1029 = vmatprep.mubr.f32.mxu0 0.0
        %1030 = vmatmul.mubr.f32.gmra.mxu0 %v934
        %v1031 = vpop.f32.mrf.mxu0
        %v1032 = vadd.f32 %v707, %v1031
        %v1033 = vpop.f32.mrf.mxu0
        %1034 = vmatprep.mubr.f32.mxu0 0.0
        %1035 = vmatmul.mubr.f32.gmra.mxu0 %v937
        %v1036 = vpop.f32.mrf.mxu0
        %v1037 = vadd.f32 %v712, %v1036
        %v1038 = vpop.f32.mrf.mxu0
        %1039 = vmatprep.mubr.f32.mxu0 0.0
        %1040 = vmatmul.mubr.f32.gmra.mxu0 %v940
        %v1041 = vpop.f32.mrf.mxu0
        %v1042 = vadd.f32 %v717, %v1041
        %v1043 = vpop.f32.mrf.mxu0
        %1044 = vmatprep.mubr.f32.mxu0 0.0
        %1045 = vmatmul.mubr.f32.gmra.mxu0 %v943
        %v1046 = vpop.f32.mrf.mxu0
        %v1047 = vadd.f32 %v722, %v1046
        %v1048 = vpop.f32.mrf.mxu0
        %1049 = vmatprep.mubr.f32.mxu0 0.0
        %1050 = vmatmul.mubr.f32.gmra.mxu0 %v946
        %v1051 = vpop.f32.mrf.mxu0
        %v1052 = vadd.f32 %v727, %v1051
        %v1053 = vpop.f32.mrf.mxu0
        %1054 = vmatprep.mubr.f32.mxu0 0.0
        %1055 = vmatmul.mubr.f32.gmra.mxu0 %v949
        %v1056 = vpop.f32.mrf.mxu0
        %v1057 = vadd.f32 %v732, %v1056
        %v1058 = vpop.f32.mrf.mxu0
        %1059 = vdwg.mxu0
        %v1060 = vadd.f32 %v1022, %v888
        %v1061 = vadd.f32 %v1027, %v893
        %v1062 = vadd.f32 %v1032, %v898
        %v1063 = vadd.f32 %v1037, %v903
        %v1064 = vadd.f32 %v1042, %v908
        %v1065 = vadd.f32 %v1047, %v913
        %v1066 = vadd.f32 %v1052, %v918
        %v1067 = vadd.f32 %v1057, %v923
        %v1068 = vld [vmem:[%s11] sm:$0xff]
        %v1069 = vld [vmem:[%s10] sm:$0x3]
        %v1070 = vld [vmem:[%s466] sm:$0xf]
        %v1071 = vld [vmem:[%s466 + $0x4] sm:$0x3]
        %v1072 = vld [vmem:[%s8] sm:$0xf]
        %v1073 = vld [vmem:[%s8 + $0x4] sm:$0xf]
        %v1074 = vld [vmem:[%s8 + $0x8] sm:$0xf]
        %v1075 = vld [vmem:[%s8 + $0xc] sm:$0xf]
        %v1076 = vld [vmem:[%s8 + $0x10] sm:$0xf]
        %v1077 = vld [vmem:[%s8 + $0x14] sm:$0xf]
        %v1078 = vld [vmem:[%s8 + $0x18] sm:$0xf]
        %v1079 = vld [vmem:[%s8 + $0x1c] sm:$0xf]
        %v1080 = vlaneseq
        %v1081 = vshrl.u32 %v1080, 7
        %v1082 = vsub.s32 0, %v1081
        %v1083 = vrot.slane %v1069, %v1082
        %v1086 = vunpack.c.l.b16 %v1070
        %v1087 = vunpack.c.l.b16 %v1071
        %v1088 = vpack.c.b16 %v1087, %v1086
        %v1097 = vunpack.c.l.b16 %v1072
        %v1098 = vunpack.c.l.b16 %v1073
        %v1099 = vunpack.c.l.b16 %v1074
        %v1100 = vunpack.c.l.b16 %v1075
        %v1101 = vunpack.c.l.b16 %v1076
        %v1102 = vunpack.c.l.b16 %v1077
        %v1103 = vunpack.c.l.b16 %v1078
        %v1104 = vunpack.c.l.b16 %v1079
        %v1105 = vpack.c.b16 %v1098, %v1097
        %v1106 = vpack.c.b16 %v1100, %v1099
        %v1107 = vpack.c.b16 %v1102, %v1101
        %v1108 = vpack.c.b16 %v1104, %v1103
        %vm1113 = vcmask 523264
        %v1115 = vsel %vm1113, %v1088, 0
        %1117 = vmatprep.subr.bf16.mxu0 0
        %1118 = vmatpush1.bf16.msra.mxu0 0
        %1119 = vmatprep.subr.bf16.mxu0 0
        %1120 = vmatpush1.bf16.msra.mxu0 0
        %1121 = vmatprep.subr.bf16.mxu0 0
        %1122 = vmatpush1.bf16.msra.mxu0 0
        %1123 = vmatprep.subr.bf16.mxu0 0
        %1124 = vmatpush1.bf16.msra.mxu0 0
        %1125 = vmatprep.subr.bf16.mxu0 0
        %1126 = vmatpush1.bf16.msra.mxu0 %v1108
        %1127 = vmatprep.subr.bf16.mxu0 0
        %1128 = vmatpush1.bf16.msra.mxu0 %v1107
        %1129 = vmatprep.subr.bf16.mxu0 0
        %1130 = vmatpush1.bf16.msra.mxu0 %v1106
        %1131 = vmatprep.subr.bf16.mxu0 0
        %1132 = vmatpush1.bf16.msra.mxu0 %v1105
        %1133 = vmatprep.subr.bf16.mxu0 0
        %1134 = vmatpush2.bf16.msra.mxu0 0
        %1135 = vmatprep.subr.bf16.mxu0 0
        %1136 = vmatpush2.bf16.msra.mxu0 0
        %1137 = vmatprep.subr.bf16.mxu0 0
        %1138 = vmatpush2.bf16.msra.mxu0 0
        %1139 = vmatprep.subr.bf16.mxu0 0
        %1140 = vmatpush2.bf16.msra.mxu0 0
        %1141 = vmatprep.subr.bf16.mxu0 0
        %1142 = vmatpush2.bf16.msra.mxu0 0
        %1143 = vmatprep.subr.bf16.mxu0 0
        %1144 = vmatpush2.bf16.msra.mxu0 0
        %1145 = vmatprep.subr.bf16.mxu0 0
        %1146 = vmatpush2.bf16.msra.mxu0 0
        %1147 = vmatprep.subr.bf16.mxu0 0
        %1148 = vmatpush2.bf16.msra.mxu0 0
        %1149 = vmatprep.mubr.bf16.mxu0 0
        %1150 = vmatmul.mubr.bf16.gmra.mxu0 %v1115
        %v1151 = vpop.f32.mrf.mxu0
        %v1152 = vadd.f32 %v1083, %v1151
        %v1153 = vpop.f32.mrf.mxu0
        %v1154 = vpop.f32.mrf.mxu0
        %v1155 = vadd.f32 %v1083, %v1154
        %v1156 = vpop.f32.mrf.mxu0
        %1157 = vdwg.mxu0
        %1158 = vadd.xlane.f32.xlu0 %v1152
        %v1159 = vpop.xlane.xlu0 %1158
        %vm1160 = vcmask 1042432
        %v1161 = vsel %vm1160, %v1155, 0.0
        %1162 = vadd.xlane.f32.xlu0 %v1161
        %v1163 = vpop.xlane.xlu0 %1162
        %v1164 = vrcp.pop 128.0
        %v1165 = vmul.f32 %v1159, %v1164
        %v1166 = vmul.f32 %v1163, %v1164
        %v1167 = vsub.f32 %v1152, %v1165
        %v1168 = vsub.f32 %v1155, %v1166
        %v1169 = vmul.f32 %v1167, %v1167
        %v1170 = vmul.f32 %v1168, %v1168
        %1171 = vadd.xlane.f32.xlu0 %v1169
        %v1172 = vpop.xlane.xlu0 %1171
        %v1173 = vsel %vm1160, %v1170, 0.0
        %1174 = vadd.xlane.f32.xlu0 %v1173
        %v1175 = vpop.xlane.xlu0 %1174
        %v1176 = vmul.f32 %v1172, %v1164
        %v1177 = vmul.f32 %v1175, %v1164
        %v1178 = vadd.f32 %v1176, 1e-12
        %v1179 = vadd.f32 %v1177, 1e-12
        %v1180 = vrsqrt.pop %v1178
        %v1181 = vrsqrt.pop %v1179
        %v1182 = vmul.f32 %v1167, %v1180
        %v1183 = vmul.f32 %v1168, %v1181
        %v1184 = vlaneseq
        %v1185 = vshrl.u32 %v1184, 7
        %v1186 = vsub.s32 0, %v1185
        %v1187 = vrot.slane %v1068, %v1186
        %v1188 = vmul.f32 %v1182, %v1187
        %v1189 = vmul.f32 %v1183, %v1187
        %v1190 = vlaneseq
        %v1191 = vshrl.u32 %v1190, 7
        %v1192 = vsub.s32 1, %v1191
        %v1193 = vrot.slane %v1068, %v1192
        %v1194 = vadd.f32 %v1188, %v1193
        %v1195 = vadd.f32 %v1189, %v1193
        %v1196 = vld [vmem:[%s471] sm:$0xff]
        %v1197 = vld [vmem:[%s471 + $0x8] sm:$0x7]
        %v1198 = vld [vmem:[%s9] sm:$0x1f]
        %v1199 = vlaneseq
        %v1200 = vshrl.u32 %v1199, 7
        %v1201 = vsub.s32 1, %v1200
        %v1202 = vrot.slane %v1069, %v1201
        %vm1203 = vcmask 39936
        %v1205 = vsel %vm1203, %v1196, 0
        %v1208 = vsel %vm1203, %v1197, 0
        %vm1210 = vcmask 1044480
        %v1212 = vsel %vm1210, %v1198, 0
        %1214 = vmatprep.subr.mxu0 0.0
        %1215 = vmatpush1.msra.mxu0 0.0
        %1216 = vmatprep.subr.mxu0 0.0
        %1217 = vmatpush1.msra.mxu0 0.0
        %1218 = vmatprep.subr.mxu0 0.0
        %1219 = vmatpush1.msra.mxu0 0.0
        %1220 = vmatprep.subr.mxu0 0.0
        %1221 = vmatpush1.msra.mxu0 0.0
        %1222 = vmatprep.subr.mxu0 0.0
        %1223 = vmatpush1.msra.mxu0 0.0
        %1224 = vmatprep.subr.mxu0 0.0
        %1225 = vmatpush1.msra.mxu0 0.0
        %1226 = vmatprep.subr.mxu0 0.0
        %1227 = vmatpush1.msra.mxu0 0.0
        %1228 = vmatprep.subr.mxu0 0.0
        %1229 = vmatpush1.msra.mxu0 0.0
        %1230 = vmatprep.subr.mxu0 0.0
        %1231 = vmatpush1.msra.mxu0 0.0
        %1232 = vmatprep.subr.mxu0 0.0
        %1233 = vmatpush1.msra.mxu0 0.0
        %1234 = vmatprep.subr.mxu0 0.0
        %1235 = vmatpush1.msra.mxu0 0.0
        %1236 = vmatprep.subr.mxu0 0.0
        %1237 = vmatpush1.msra.mxu0 0.0
        %1238 = vmatprep.subr.mxu0 0.0
        %1239 = vmatpush1.msra.mxu0 0.0
        %1240 = vmatprep.subr.mxu0 0.0
        %1241 = vmatpush1.msra.mxu0 0.0
        %1242 = vmatprep.subr.mxu0 0.0
        %1243 = vmatpush1.msra.mxu0 0.0
        %1244 = vmatprep.subr.mxu0 0.0
        %1245 = vmatpush1.msra.mxu0 %v1212
        %1246 = vmatprep.subr.mxu0 0.0
        %1247 = vmatpush2.msra.mxu0 0.0
        %1248 = vmatprep.subr.mxu0 0.0
        %1249 = vmatpush2.msra.mxu0 0.0
        %1250 = vmatprep.subr.mxu0 0.0
        %1251 = vmatpush2.msra.mxu0 0.0
        %1252 = vmatprep.subr.mxu0 0.0
        %1253 = vmatpush2.msra.mxu0 0.0
        %1254 = vmatprep.subr.mxu0 0.0
        %1255 = vmatpush2.msra.mxu0 0.0
        %1256 = vmatprep.subr.mxu0 0.0
        %1257 = vmatpush2.msra.mxu0 0.0
        %1258 = vmatprep.subr.mxu0 0.0
        %1259 = vmatpush2.msra.mxu0 0.0
        %1260 = vmatprep.subr.mxu0 0.0
        %1261 = vmatpush2.msra.mxu0 0.0
        %1262 = vmatprep.subr.mxu0 0.0
        %1263 = vmatpush2.msra.mxu0 0.0
        %1264 = vmatprep.subr.mxu0 0.0
        %1265 = vmatpush2.msra.mxu0 0.0
        %1266 = vmatprep.subr.mxu0 0.0
        %1267 = vmatpush2.msra.mxu0 0.0
        %1268 = vmatprep.subr.mxu0 0.0
        %1269 = vmatpush2.msra.mxu0 0.0
        %1270 = vmatprep.subr.mxu0 0.0
        %1271 = vmatpush2.msra.mxu0 0.0
        %1272 = vmatprep.subr.mxu0 0.0
        %1273 = vmatpush2.msra.mxu0 0.0
        %1274 = vmatprep.subr.mxu0 0.0
        %1275 = vmatpush2.msra.mxu0 0.0
        %1276 = vmatprep.subr.mxu0 0.0
        %1277 = vmatpush2.msra.mxu0 0.0
        %1278 = vmatprep.mubr.f32.mxu0 0.0
        %1279 = vmatmul.mubr.f32.gmra.mxu0 %v1205
        %v1280 = vpop.f32.mrf.mxu0
        %v1281 = vadd.f32 %v1202, %v1280
        %v1282 = vpop.f32.mrf.mxu0
        %1283 = vmatprep.mubr.f32.mxu0 0.0
        %1284 = vmatmul.mubr.f32.gmra.mxu0 %v1208
        %v1285 = vpop.f32.mrf.mxu0
        %v1286 = vadd.f32 %v1202, %v1285
        %v1287 = vpop.f32.mrf.mxu0
        %1288 = vdwg.mxu0
        %1289 = vadd.xlane.f32.xlu0 %v1281
        %v1290 = vpop.xlane.xlu0 %1289
        %v1291 = vsel %vm1160, %v1286, 0.0
        %1292 = vadd.xlane.f32.xlu0 %v1291
        %v1293 = vpop.xlane.xlu0 %1292
        %v1294 = vmul.f32 %v1290, %v1164
        %v1295 = vmul.f32 %v1293, %v1164
        %v1296 = vsub.f32 %v1281, %v1294
        %v1297 = vsub.f32 %v1286, %v1295
        %v1298 = vmul.f32 %v1296, %v1296
        %v1299 = vmul.f32 %v1297, %v1297
        %1300 = vadd.xlane.f32.xlu0 %v1298
        %v1301 = vpop.xlane.xlu0 %1300
        %v1302 = vsel %vm1160, %v1299, 0.0
        %1303 = vadd.xlane.f32.xlu0 %v1302
        %v1304 = vpop.xlane.xlu0 %1303
        %v1305 = vmul.f32 %v1301, %v1164
        %v1306 = vmul.f32 %v1304, %v1164
        %v1307 = vadd.f32 %v1305, 1e-12
        %v1308 = vadd.f32 %v1306, 1e-12
        %v1309 = vrsqrt.pop %v1307
        %v1310 = vrsqrt.pop %v1308
        %v1311 = vmul.f32 %v1296, %v1309
        %v1312 = vmul.f32 %v1297, %v1310
        %v1313 = vlaneseq
        %v1314 = vshrl.u32 %v1313, 7
        %v1315 = vsub.s32 2, %v1314
        %v1316 = vrot.slane %v1068, %v1315
        %v1317 = vmul.f32 %v1311, %v1316
        %v1318 = vmul.f32 %v1312, %v1316
        %v1319 = vlaneseq
        %v1320 = vshrl.u32 %v1319, 7
        %v1321 = vsub.s32 3, %v1320
        %v1322 = vrot.slane %v1068, %v1321
        %v1323 = vadd.f32 %v1317, %v1322
        %v1324 = vadd.f32 %v1318, %v1322
        %v1325 = vadd.f32 %v1194, %v1323
        %v1326 = vadd.f32 %v1195, %v1324
        %1327 = vadd.xlane.f32.xlu0 %v1325
        %v1328 = vpop.xlane.xlu0 %1327
        %v1329 = vsel %vm1160, %v1326, 0.0
        %1330 = vadd.xlane.f32.xlu0 %v1329
        %v1331 = vpop.xlane.xlu0 %1330
        %v1332 = vmul.f32 %v1328, %v1164
        %v1333 = vmul.f32 %v1331, %v1164
        %v1334 = vsub.f32 %v1325, %v1332
        %v1335 = vsub.f32 %v1326, %v1333
        %v1336 = vmul.f32 %v1334, %v1334
        %v1337 = vmul.f32 %v1335, %v1335
        %1338 = vadd.xlane.f32.xlu0 %v1336
        %v1339 = vpop.xlane.xlu0 %1338
        %v1340 = vsel %vm1160, %v1337, 0.0
        %1341 = vadd.xlane.f32.xlu0 %v1340
        %v1342 = vpop.xlane.xlu0 %1341
        %v1343 = vmul.f32 %v1339, %v1164
        %v1344 = vmul.f32 %v1342, %v1164
        %v1345 = vadd.f32 %v1343, 1e-12
        %v1346 = vadd.f32 %v1344, 1e-12
        %v1347 = vrsqrt.pop %v1345
        %v1348 = vrsqrt.pop %v1346
        %v1349 = vmul.f32 %v1334, %v1347
        %v1350 = vmul.f32 %v1335, %v1348
        %v1351 = vlaneseq
        %v1352 = vshrl.u32 %v1351, 7
        %v1353 = vsub.s32 4, %v1352
        %v1354 = vrot.slane %v1068, %v1353
        %v1355 = vmul.f32 %v1349, %v1354
        %v1356 = vmul.f32 %v1350, %v1354
        %v1357 = vlaneseq
        %v1358 = vshrl.u32 %v1357, 7
        %v1359 = vsub.s32 5, %v1358
        %v1360 = vrot.slane %v1068, %v1359
        %v1361 = vadd.f32 %v1355, %v1360
        %v1362 = vadd.f32 %v1356, %v1360
        %vm1365 = vcmask 1040384
        %v1366 = vrot.slane %v1361, 7
        %v1367 = vrot.slane %v1362, 7
        %v1368 = vsel %vm1365, %v1366, %v1367
        %v1371 = vsel %vm1365, 0.0, %v1366
        %v1372 = vsel %vm817, %v1368, 0.0
        %v1373 = vadd.f32 %v1060, %v1371
        %v1374 = vadd.f32 %v1061, %v1372
        %v1375 = vadd.f32 %v1062, 0.0
        %v1376 = vadd.f32 %v1063, 0.0
        %v1377 = vadd.f32 %v1064, 0.0
        %v1378 = vadd.f32 %v1065, 0.0
        %v1379 = vadd.f32 %v1066, 0.0
        %v1380 = vadd.f32 %v1067, 0.0
        %1381 = vadd.xlane.f32.xlu0 %v1373
        %v1382 = vpop.xlane.xlu0 %1381
        %1383 = vadd.xlane.f32.xlu0 %v1374
        %v1384 = vpop.xlane.xlu0 %1383
        %1385 = vadd.xlane.f32.xlu0 %v1375
        %v1386 = vpop.xlane.xlu0 %1385
        %1387 = vadd.xlane.f32.xlu0 %v1376
        %v1388 = vpop.xlane.xlu0 %1387
        %1389 = vadd.xlane.f32.xlu0 %v1377
        %v1390 = vpop.xlane.xlu0 %1389
        %1391 = vadd.xlane.f32.xlu0 %v1378
        %v1392 = vpop.xlane.xlu0 %1391
        %1393 = vadd.xlane.f32.xlu0 %v1379
        %v1394 = vpop.xlane.xlu0 %1393
        %1395 = vadd.xlane.f32.xlu0 %v1380
        %v1396 = vpop.xlane.xlu0 %1395
        %v1397 = vmul.f32 %v1382, %v1164
        %v1398 = vmul.f32 %v1384, %v1164
        %v1399 = vmul.f32 %v1386, %v1164
        %v1400 = vmul.f32 %v1388, %v1164
        %v1401 = vmul.f32 %v1390, %v1164
        %v1402 = vmul.f32 %v1392, %v1164
        %v1403 = vmul.f32 %v1394, %v1164
        %v1404 = vmul.f32 %v1396, %v1164
        %v1405 = vsub.f32 %v1373, %v1397
        %v1406 = vsub.f32 %v1374, %v1398
        %v1407 = vsub.f32 %v1375, %v1399
        %v1408 = vsub.f32 %v1376, %v1400
        %v1409 = vsub.f32 %v1377, %v1401
        %v1410 = vsub.f32 %v1378, %v1402
        %v1411 = vsub.f32 %v1379, %v1403
        %v1412 = vsub.f32 %v1380, %v1404
        %v1413 = vmul.f32 %v1405, %v1405
        %v1414 = vmul.f32 %v1406, %v1406
        %v1415 = vmul.f32 %v1407, %v1407
        %v1416 = vmul.f32 %v1408, %v1408
        %v1417 = vmul.f32 %v1409, %v1409
        %v1418 = vmul.f32 %v1410, %v1410
        %v1419 = vmul.f32 %v1411, %v1411
        %v1420 = vmul.f32 %v1412, %v1412
        %1421 = vadd.xlane.f32.xlu0 %v1413
        %v1422 = vpop.xlane.xlu0 %1421
        %1423 = vadd.xlane.f32.xlu0 %v1414
        %v1424 = vpop.xlane.xlu0 %1423
        %1425 = vadd.xlane.f32.xlu0 %v1415
        %v1426 = vpop.xlane.xlu0 %1425
        %1427 = vadd.xlane.f32.xlu0 %v1416
        %v1428 = vpop.xlane.xlu0 %1427
        %1429 = vadd.xlane.f32.xlu0 %v1417
        %v1430 = vpop.xlane.xlu0 %1429
        %1431 = vadd.xlane.f32.xlu0 %v1418
        %v1432 = vpop.xlane.xlu0 %1431
        %1433 = vadd.xlane.f32.xlu0 %v1419
        %v1434 = vpop.xlane.xlu0 %1433
        %1435 = vadd.xlane.f32.xlu0 %v1420
        %v1436 = vpop.xlane.xlu0 %1435
        %v1437 = vmul.f32 %v1422, %v1164
        %v1438 = vmul.f32 %v1424, %v1164
        %v1439 = vmul.f32 %v1426, %v1164
        %v1440 = vmul.f32 %v1428, %v1164
        %v1441 = vmul.f32 %v1430, %v1164
        %v1442 = vmul.f32 %v1432, %v1164
        %v1443 = vmul.f32 %v1434, %v1164
        %v1444 = vmul.f32 %v1436, %v1164
        %v1445 = vadd.f32 %v1437, 1e-12
        %v1446 = vadd.f32 %v1438, 1e-12
        %v1447 = vadd.f32 %v1439, 1e-12
        %v1448 = vadd.f32 %v1440, 1e-12
        %v1449 = vadd.f32 %v1441, 1e-12
        %v1450 = vadd.f32 %v1442, 1e-12
        %v1451 = vadd.f32 %v1443, 1e-12
        %v1452 = vadd.f32 %v1444, 1e-12
        %v1453 = vrsqrt.pop %v1445
        %v1454 = vrsqrt.pop %v1446
        %v1455 = vrsqrt.pop %v1447
        %v1456 = vrsqrt.pop %v1448
        %v1457 = vrsqrt.pop %v1449
        %v1458 = vrsqrt.pop %v1450
        %v1459 = vrsqrt.pop %v1451
        %v1460 = vrsqrt.pop %v1452
        %v1461 = vmul.f32 %v1405, %v1453
        %v1462 = vmul.f32 %v1406, %v1454
        %v1463 = vmul.f32 %v1407, %v1455
        %v1464 = vmul.f32 %v1408, %v1456
        %v1465 = vmul.f32 %v1409, %v1457
        %v1466 = vmul.f32 %v1410, %v1458
        %v1467 = vmul.f32 %v1411, %v1459
        %v1468 = vmul.f32 %v1412, %v1460
        %v1469 = vlaneseq
        %v1470 = vshrl.u32 %v1469, 7
        %v1471 = vsub.s32 6, %v1470
        %v1472 = vrot.slane %v1068, %v1471
        %v1473 = vmul.f32 %v1461, %v1472
        %v1474 = vmul.f32 %v1462, %v1472
        %v1475 = vmul.f32 %v1463, %v1472
        %v1476 = vmul.f32 %v1464, %v1472
        %v1477 = vmul.f32 %v1465, %v1472
        %v1478 = vmul.f32 %v1466, %v1472
        %v1479 = vmul.f32 %v1467, %v1472
        %v1480 = vmul.f32 %v1468, %v1472
        %v1481 = vlaneseq
        %v1482 = vshrl.u32 %v1481, 7
        %v1483 = vsub.s32 7, %v1482
        %v1484 = vrot.slane %v1068, %v1483
        %v1485 = vadd.f32 %v1473, %v1484
        %v1486 = vadd.f32 %v1474, %v1484
        %v1487 = vadd.f32 %v1475, %v1484
        %v1488 = vadd.f32 %v1476, %v1484
        %v1489 = vadd.f32 %v1477, %v1484
        %v1490 = vadd.f32 %v1478, %v1484
        %v1491 = vadd.f32 %v1479, %v1484
        %v1492 = vadd.f32 %v1480, %v1484
        %1493 = vst [vmem:[%s451] sm:$0xff] %v1485
        %1494 = vst [vmem:[%s451 + $0x8] sm:$0xff] %v1486
        %1495 = vst [vmem:[%s451 + $0x10] sm:$0xff] %v1487
        %1496 = vst [vmem:[%s451 + $0x18] sm:$0xff] %v1488
        %1497 = vst [vmem:[%s451 + $0x20] sm:$0xff] %v1489
        %1498 = vst [vmem:[%s451 + $0x28] sm:$0xff] %v1490
        %1499 = vst [vmem:[%s451 + $0x30] sm:$0xff] %v1491
        %1500 = vst [vmem:[%s451 + $0x38] sm:$0xff] %v1492
        %s1501 = sand.u32 %s306, 1
        %s1502 = scalar_lea.sflag [#allocation3], %s1501
        %s1503 = sand.u32 %s306, 1
        %s1504 = smul.addr %s1503, 64
        %s1505 = scalar_lea.vmem [#allocation2], %s1504
        // Predicated region
        $region69: #{tpu_custom_call.1} parent=67 // pred_check
          %p1506 = pneg %p316
        $region70: #{tpu_custom_call.1} parent=67 // pred_check_branch
          %1508 = sbr.rel (%p1506) target = $region72
        $region71: #{tpu_custom_call.1} parent=67 // pred_region
          %s1510 = ssub.s32 1024, 1024
          %1511 = vsyncadd %s1502, %s1510
          %s1512 = smul.addr %s26, 8
          %s1513 = smul.addr %s1512, 128
          %s1514 = scalar_lea.hbm %s12, %s1513
          %s1515 = sshll.u32 %s1505, 4
          %s1516 = int_to_ptr.vmem [resolvable:$true] %s1515
          %1521 = dma.vmem_to_hbm [thread:$0]  %s1516, 1024, %s1514, %s1502, 128, 128, 8
        $region72: #{tpu_custom_call.1} parent=67 // pred_fallthru
          _
      $region68: #{tpu_custom_call.1} parent=5 // pred_fallthru
        _
      %p1522 = scmp.le.s32.totalorder 2, %s21
      // Predicated region
      $region73: #{tpu_custom_call.1} parent=5 // pred_check
        %p1523 = pneg %p1522
      $region74: #{tpu_custom_call.1} parent=5 // pred_check_branch
        %1525 = sbr.rel (%p1523) target = $region76
      $region75: #{tpu_custom_call.1} parent=5 // pred_region
        %s1526 = ssub.s32 %s21, 2
        // Predicated region
        $region77: #{tpu_custom_call.1} parent=75 // pred_check
          %p1527 = pneg %p322
        $region78: #{tpu_custom_call.1} parent=75 // pred_check_branch
          %1529 = sbr.rel (%p1527) target = $region80
        $region79: #{tpu_custom_call.1} parent=75 // pred_region
          %s1530 = sand.u32 %s307, 1
          %s1531 = scalar_lea.sflag [#allocation3], %s1530
          %s1532 = sand.u32 %s307, 1
          %s1533 = smul.addr %s1532, 64
          %s1534 = scalar_lea.vmem [#allocation2], %s1533
          %1535 = dma.done %s1531, 1024
        $region80: #{tpu_custom_call.1} parent=75 // pred_fallthru
          _
      $region76: #{tpu_custom_call.1} parent=5 // pred_fallthru
        _
    $region6: #{tpu_custom_call.1} parent=1 // loop_footer
      %s25 = sadd.s32 1, %s21
    $region7: #{tpu_custom_call.1} parent=1 // loop_footer_branch
      %20 = sbr.rel target = $region3
    $region8: #{tpu_custom_call.1} parent=1 // loop_exit
      _
    %1536 = vsyncpa [#allocation3], 1
    %s1537 = scalar_lea.sflag [#allocation3], 1
    %1538 = vsyncpa %s1537, 1

</llo_original>
